<compile_context>
chip_gen: v6e
topology: v6e:2x2x1
jax: 0.10.0
libtpu: 0.0.40
codegen_flags: <defaults>
</compile_context>

<pallas_src>
import jax
import jax.numpy as jnp
from jax import lax
from jax.experimental import pallas as pl
from jax.experimental.pallas import tpu as pltpu


def gru_kernel(xp_ref, wih1p_ref, cvec_ref, wrec_ref, wfc_ref, bfc_ref,
               out_ref, a_ref):
    """Whole 2-layer GRU + FC head, one invocation, one fused dot per step."""
    Bp = out_ref.shape[0]            # padded batch (sublane multiple)
    H2 = wrec_ref.shape[0]           # packed hidden width = 2*H (one lane tile)
    H = H2 // 2                      # per-layer hidden size
    S = xp_ref.shape[0] // Bp - 1    # real timesteps (one zero step appended)
    f32 = jnp.float32

    # ---- packed layer-1 input projection for ALL timesteps + all constant
    # biases: one MXU call, laid out exactly like the per-step dot output. ----
    a_ref[...] = (jnp.dot(xp_ref[...], wih1p_ref[...],
                          preferred_element_type=f32)
                  + cvec_ref[...])

    wrec = wrec_ref[...]             # (2H, 8H) bf16, weight-stationary

    def cell(ga, hc):
        # ga columns (each H wide): [r1|r2 | z1|z2 | ghn1|ghn2 | gxn1|gxn2]
        rz = jax.nn.sigmoid(ga[:, :2 * H2])
        r, z = rz[:, :H2], rz[:, H2:]
        n = jnp.tanh(ga[:, 3 * H2:] + r * ga[:, 2 * H2:3 * H2])
        return (1.0 - z) * n + z * hc          # packed [h1_new | h2_new]

    # ---- prologue (t = 0): both hidden states are zero -> recurrent dot is 0.
    hc = cell(a_ref[:Bp, :], jnp.zeros((Bp, H2), f32))
    lane = lax.broadcasted_iota(jnp.int32, (Bp, H2), 1)
    hc = jnp.where(lane < H, hc, 0.0)          # keep h1[0]; reset h2 half to 0

    # ---- skewed recurrence: iteration i enters with hc = [h1[i-1] | h2[i-2]]
    # and produces [h1[i] | h2[i-1]] with a single fused dot. ----
    def step(i, hc):
        g = jnp.dot(hc.astype(jnp.bfloat16), wrec,
                    preferred_element_type=f32)
        base = pl.multiple_of(i * Bp, Bp)
        ga = g + a_ref[pl.ds(base, Bp), :]
        return cell(ga, hc)

    unroll = True if S <= 8 else 8             # bounded unroll for long S
    hc = lax.fori_loop(1, S + 1, step, hc, unroll=unroll)

    # ---- FC head on h2[S-1] (right half of hc); layer-1 rows of wfc are zero,
    # so the discarded h1[S] lanes contribute nothing. ----
    out_ref[...] = (jnp.dot(hc.astype(jnp.bfloat16), wfc_ref[...],
                            preferred_element_type=f32)
                    + bfc_ref[...])


def _round_up(x, m):
    return (x + m - 1) // m * m


def _pack_params(params, input_size, H, Op):
    """Build the packed / fused weight layout (zero-fill is numerics-exact)."""
    f32 = jnp.float32
    H2 = 2 * H                       # packed hidden width
    NG = 8 * H                       # packed gate width (4 tiles of 2H)

    wih1, whh1 = params["wih1"], params["whh1"]
    wih2, whh2 = params["wih2"], params["whh2"]
    bih1, bhh1 = params["bih1"], params["bhh1"]
    bih2, bhh2 = params["bih2"], params["bhh2"]

    def gate(w, g):                  # g: 0=r, 1=z, 2=n (PyTorch order)
        return w[:, g * H:(g + 1) * H]

    # fused recurrent / layer-2-input weight: rows [h1 | h2] -> packed gates
    wrec = jnp.zeros((H2, NG), f32)
    wrec = wrec.at[:H, 0 * H:1 * H].set(gate(whh1, 0))   # gh1_r
    wrec = wrec.at[:H, 1 * H:2 * H].set(gate(wih2, 0))   # gx2_r (+ gh2_r below)
    wrec = wrec.at[H:, 1 * H:2 * H].set(gate(whh2, 0))
    wrec = wrec.at[:H, 2 * H:3 * H].set(gate(whh1, 1))   # gh1_z
    wrec = wrec.at[:H, 3 * H:4 * H].set(gate(wih2, 1))   # gx2_z + gh2_z
    wrec = wrec.at[H:, 3 * H:4 * H].set(gate(whh2, 1))
    wrec = wrec.at[:H, 4 * H:5 * H].set(gate(whh1, 2))   # gh1_n
    wrec = wrec.at[H:, 5 * H:6 * H].set(gate(whh2, 2))   # gh2_n
    wrec = wrec.at[:H, 7 * H:8 * H].set(gate(wih2, 2))   # gx2_n

    # layer-1 input projection scattered into the packed layout
    wih1p = jnp.zeros((input_size, NG), f32)
    wih1p = wih1p.at[:, 0 * H:1 * H].set(gate(wih1, 0))  # gx1_r
    wih1p = wih1p.at[:, 2 * H:3 * H].set(gate(wih1, 1))  # gx1_z
    wih1p = wih1p.at[:, 6 * H:7 * H].set(gate(wih1, 2))  # gx1_n

    # constant bias row (r/z hidden biases folded in; n-gate b_hh kept separate)
    cvec = jnp.zeros((1, NG), f32)
    cvec = cvec.at[:, 0 * H:1 * H].set(gate(bih1, 0) + gate(bhh1, 0))
    cvec = cvec.at[:, 1 * H:2 * H].set(gate(bih2, 0) + gate(bhh2, 0))
    cvec = cvec.at[:, 2 * H:3 * H].set(gate(bih1, 1) + gate(bhh1, 1))
    cvec = cvec.at[:, 3 * H:4 * H].set(gate(bih2, 1) + gate(bhh2, 1))
    cvec = cvec.at[:, 4 * H:5 * H].set(gate(bhh1, 2))
    cvec = cvec.at[:, 5 * H:6 * H].set(gate(bhh2, 2))
    cvec = cvec.at[:, 6 * H:7 * H].set(gate(bih1, 2))
    cvec = cvec.at[:, 7 * H:8 * H].set(gate(bih2, 2))

    # FC head on the packed state: layer-1 rows zeroed, output lane-padded
    O = params["wfc"].shape[1]
    wfc = jnp.zeros((H2, Op), f32)
    wfc = wfc.at[H:, :O].set(params["wfc"])
    bfc = jnp.pad(params["bfc"], ((0, 0), (0, Op - O)))

    return (wih1p.astype(jnp.bfloat16), cvec,
            wrec.astype(jnp.bfloat16), wfc.astype(jnp.bfloat16), bfc)


def gru_model_forward(x, params):
    """x: (batch, seq, input_size) float32 -> (batch, output_size) float32."""
    B, S, I = x.shape
    H = params["whh1"].shape[0]
    O = params["wfc"].shape[1]
    assert (2 * H) % 128 == 0, "dense gate packing assumes 2*hidden % 128 == 0"

    Bp = max(8, _round_up(B, 8))          # full sublanes
    Op = max(128, _round_up(O, 128))      # lane-dense output store
    NG = 8 * H                            # packed gate width

    wih1p, cvec, wrec, wfc, bfc = _pack_params(params, I, H, Op)

    # time-major, batch padded to sublanes, one extra zero timestep so the
    # skewed loop's last (discarded) layer-1 slice stays in bounds.
    x_t = jnp.transpose(x, (1, 0, 2))                       # (S, B, I)
    x_t = jnp.pad(x_t, ((0, 1), (0, Bp - B), (0, 0)))       # (S+1, Bp, I)
    xp = x_t.reshape((S + 1) * Bp, I).astype(jnp.bfloat16)

    vmem = lambda: pl.BlockSpec(memory_space=pltpu.MemorySpace.VMEM)

    out = pl.pallas_call(
        gru_kernel,
        out_shape=jax.ShapeDtypeStruct((Bp, Op), jnp.float32),
        in_specs=[vmem() for _ in range(6)],
        out_specs=vmem(),
        scratch_shapes=[pltpu.VMEM(((S + 1) * Bp, NG), jnp.float32)],  # packed A
        compiler_params=pltpu.CompilerParams(
            vmem_limit_bytes=32 * 1024 * 1024),
    )(xp, wih1p, cvec, wrec, wfc, bfc)

    return out[:B, :O]


def reference_forward(x, params):
    """Pure-JAX (f32) reference of the PyTorch forward for correctness checks."""
    B, S, I = x.shape
    H = params["whh1"].shape[0]

    def cell(x_t, h, wih, whh, bih, bhh):
        gx = x_t @ wih + bih
        gh = h @ whh + bhh
        r = jax.nn.sigmoid(gx[:, :H] + gh[:, :H])
        z = jax.nn.sigmoid(gx[:, H:2 * H] + gh[:, H:2 * H])
        n = jnp.tanh(gx[:, 2 * H:] + r * gh[:, 2 * H:])
        return (1.0 - z) * n + z * h

    h1 = jnp.zeros((B, H), jnp.float32)
    h2 = jnp.zeros((B, H), jnp.float32)
    for t in range(S):
        h1 = cell(x[:, t, :], h1, params["wih1"], params["whh1"],
                  params["bih1"], params["bhh1"])
        h2 = cell(h1, h2, params["wih2"], params["whh2"],
                  params["bih2"], params["bhh2"])
    return h2 @ params["wfc"] + params["bfc"]


def init_params(key, input_size, hidden_size, output_size):
    """Deterministic parameter init (uniform, PyTorch-like scale)."""
    H = hidden_size
    keys = jax.random.split(key, 11)
    bound = 1.0 / jnp.sqrt(jnp.float32(H))
    u = lambda k, shape: jax.random.uniform(k, shape, jnp.float32, -bound, bound)
    return {
        # layer 1: input_size -> hidden  (stored transposed: (in, 3H), [r|z|n])
        "wih1": u(keys[0], (input_size, 3 * H)),
        "whh1": u(keys[1], (H, 3 * H)),
        "bih1": u(keys[2], (1, 3 * H)),
        "bhh1": u(keys[3], (1, 3 * H)),
        # layer 2: hidden -> hidden
        "wih2": u(keys[4], (H, 3 * H)),
        "whh2": u(keys[5], (H, 3 * H)),
        "bih2": u(keys[6], (1, 3 * H)),
        "bhh2": u(keys[7], (1, 3 * H)),
        # fc: hidden -> output  (stored transposed: (H, O))
        "wfc": u(keys[8], (H, output_size)),
        "bfc": u(keys[9], (1, output_size)),
    }


if __name__ == "__main__":
    # Small shapes consistent with the module: hidden_size=64, num_layers=2,
    # output_size=1; pick batch=2, seq=8, input_size=8.
    batch, seq, input_size = 2, 8, 8
    hidden_size, output_size = 64, 1

    key = jax.random.PRNGKey(0)
    k_x, k_p = jax.random.split(key)
    x = jax.random.normal(k_x, (batch, seq, input_size), jnp.float32)
    params = init_params(k_p, input_size, hidden_size, output_size)

    out = gru_model_forward(x, params)
    out = jax.block_until_ready(out)

    ref = reference_forward(x, params)
    assert out.shape == (batch, output_size)
    # bf16 MXU operands (f32 accumulation) compound a little rounding over the
    # S-step recurrence -> looser tolerance than pure-f32.
    assert jnp.allclose(out, ref, atol=5e-2, rtol=5e-2), (out, ref)

    print("KERNEL_OK")
</pallas_src>

<mosaic_0001>
module attributes {stable_mosaic.version = 11 : i64} {
  func.func @gru_kernel(%arg0: memref<72x8xbf16, #tpu.memory_space<vmem>>, %arg1: memref<8x512xbf16, #tpu.memory_space<vmem>>, %arg2: memref<1x512xf32, #tpu.memory_space<vmem>>, %arg3: memref<128x512xbf16, #tpu.memory_space<vmem>>, %arg4: memref<128x128xbf16, #tpu.memory_space<vmem>>, %arg5: memref<1x128xf32, #tpu.memory_space<vmem>>, %arg6: memref<8x128xf32, #tpu.memory_space<vmem>>, %arg7: memref<72x512xf32, #tpu.memory_space<vmem>>) attributes {dimension_semantics = [], scalar_prefetch = 0 : i64, scratch_operands = 1 : i64, tpu.core_type = #tpu.core_type<tc>} {
    %c0 = arith.constant 0 : index
    %c0_0 = arith.constant 0 : index
    %0 = vector.load %arg0[%c0, %c0_0] : memref<72x8xbf16, #tpu.memory_space<vmem>>, vector<72x8xbf16>
    %c0_1 = arith.constant 0 : index
    %c0_2 = arith.constant 0 : index
    %1 = vector.load %arg1[%c0_1, %c0_2] : memref<8x512xbf16, #tpu.memory_space<vmem>>, vector<8x512xbf16>
    %cst = arith.constant dense<0.000000e+00> : vector<72x512xf32>
    %2 = tpu.matmul %0, %1, %cst {dimension_numbers = #tpu.dot_dimension_numbers<[1], [0], [0], [1], [0, 0, 1, 1], [], []>} : vector<72x8xbf16>, vector<8x512xbf16>, vector<72x512xf32> -> vector<72x512xf32>
    %c0_3 = arith.constant 0 : index
    %c0_4 = arith.constant 0 : index
    %3 = vector.load %arg2[%c0_3, %c0_4] : memref<1x512xf32, #tpu.memory_space<vmem>>, vector<1x512xf32>
    %4 = vector.broadcast %3 : vector<1x512xf32> to vector<72x512xf32>
    %5 = arith.addf %2, %4 : vector<72x512xf32>
    %c0_5 = arith.constant 0 : index
    %c0_6 = arith.constant 0 : index
    %6 = vector.load %arg7[%c0_5, %c0_6] : memref<72x512xf32, #tpu.memory_space<vmem>>, vector<72x512xf32>
    tpu.vector_store %arg7[%c0_5, %c0_6], %5 {strides = array<i32>} : memref<72x512xf32, #tpu.memory_space<vmem>>, vector<72x512xf32>,
    %c0_7 = arith.constant 0 : index
    %c0_8 = arith.constant 0 : index
    %7 = vector.load %arg3[%c0_7, %c0_8] : memref<128x512xbf16, #tpu.memory_space<vmem>>, vector<128x512xbf16>
    %c0_9 = arith.constant 0 : index
    %c0_10 = arith.constant 0 : index
    %8 = vector.load %arg7[%c0_9, %c0_10] : memref<72x512xf32, #tpu.memory_space<vmem>>, vector<8x512xf32>
    %cst_11 = arith.constant 0.000000e+00 : f32
    %9 = vector.broadcast %cst_11 : f32 to vector<8x128xf32>
    %10 = vector.extract_strided_slice %8 {offsets = [0, 0], sizes = [8, 256], strides = [1, 1]} : vector<8x512xf32> to vector<8x256xf32>
    %11 = arith.negf %10 : vector<8x256xf32>
    %12 = math.exp %11 : vector<8x256xf32>
    %cst_12 = arith.constant 1.000000e+00 : f32
    %13 = vector.broadcast %cst_12 : f32 to vector<8x256xf32>
    %14 = arith.addf %13, %12 : vector<8x256xf32>
    %15 = arith.divf %13, %14 : vector<8x256xf32>
    %16 = vector.extract_strided_slice %15 {offsets = [0, 0], sizes = [8, 128], strides = [1, 1]} : vector<8x256xf32> to vector<8x128xf32>
    %17 = vector.extract_strided_slice %15 {offsets = [0, 128], sizes = [8, 128], strides = [1, 1]} : vector<8x256xf32> to vector<8x128xf32>
    %18 = vector.extract_strided_slice %8 {offsets = [0, 384], sizes = [8, 128], strides = [1, 1]} : vector<8x512xf32> to vector<8x128xf32>
    %19 = vector.extract_strided_slice %8 {offsets = [0, 256], sizes = [8, 128], strides = [1, 1]} : vector<8x512xf32> to vector<8x128xf32>
    %20 = arith.mulf %16, %19 : vector<8x128xf32>
    %21 = arith.addf %18, %20 : vector<8x128xf32>
    %22 = math.tanh %21 : vector<8x128xf32>
    %cst_13 = arith.constant 1.000000e+00 : f32
    %23 = vector.broadcast %cst_13 : f32 to vector<8x128xf32>
    %24 = arith.subf %23, %17 : vector<8x128xf32>
    %25 = arith.mulf %24, %22 : vector<8x128xf32>
    %26 = arith.mulf %17, %9 : vector<8x128xf32>
    %27 = arith.addf %25, %26 : vector<8x128xf32>
    %28 = tpu.iota {dimensions = array<i32: 1>} : vector<8x128xi32>
    %c64_i32 = arith.constant 64 : i32
    %29 = vector.broadcast %c64_i32 : i32 to vector<8x128xi32>
    %30 = arith.cmpi slt, %28, %29 : vector<8x128xi32>
    %cst_14 = arith.constant 0.000000e+00 : f32
    %31 = vector.broadcast %cst_14 : f32 to vector<8x128xf32>
    %32 = arith.select %30, %27, %31 : vector<8x128xi1>, vector<8x128xf32>
    %c1_i32 = arith.constant 1 : i32
    %33 = arith.truncf %32 : vector<8x128xf32> to vector<8x128xbf16>
    %cst_15 = arith.constant dense<0.000000e+00> : vector<8x512xf32>
    %34 = tpu.matmul %33, %7, %cst_15 {dimension_numbers = #tpu.dot_dimension_numbers<[1], [0], [0], [1], [0, 0, 1, 1], [], []>} : vector<8x128xbf16>, vector<128x512xbf16>, vector<8x512xf32> -> vector<8x512xf32>
    %c8_i32 = arith.constant 8 : i32
    %35 = arith.muli %c1_i32, %c8_i32 : i32
    %36 = tpu.assume_multiple %35, 8 : i32
    %37 = arith.index_cast %36 : i32 to index
    %c0_16 = arith.constant 0 : index
    %38 = vector.load %arg7[%37, %c0_16] : memref<72x512xf32, #tpu.memory_space<vmem>>, vector<8x512xf32>
    %39 = arith.addf %34, %38 : vector<8x512xf32>
    %40 = vector.extract_strided_slice %39 {offsets = [0, 0], sizes = [8, 256], strides = [1, 1]} : vector<8x512xf32> to vector<8x256xf32>
    %41 = arith.negf %40 : vector<8x256xf32>
    %42 = math.exp %41 : vector<8x256xf32>
    %cst_17 = arith.constant 1.000000e+00 : f32
    %43 = vector.broadcast %cst_17 : f32 to vector<8x256xf32>
    %44 = arith.addf %43, %42 : vector<8x256xf32>
    %45 = arith.divf %43, %44 : vector<8x256xf32>
    %46 = vector.extract_strided_slice %45 {offsets = [0, 0], sizes = [8, 128], strides = [1, 1]} : vector<8x256xf32> to vector<8x128xf32>
    %47 = vector.extract_strided_slice %45 {offsets = [0, 128], sizes = [8, 128], strides = [1, 1]} : vector<8x256xf32> to vector<8x128xf32>
    %48 = vector.extract_strided_slice %39 {offsets = [0, 384], sizes = [8, 128], strides = [1, 1]} : vector<8x512xf32> to vector<8x128xf32>
    %49 = vector.extract_strided_slice %39 {offsets = [0, 256], sizes = [8, 128], strides = [1, 1]} : vector<8x512xf32> to vector<8x128xf32>
    %50 = arith.mulf %46, %49 : vector<8x128xf32>
    %51 = arith.addf %48, %50 : vector<8x128xf32>
    %52 = math.tanh %51 : vector<8x128xf32>
    %cst_18 = arith.constant 1.000000e+00 : f32
    %53 = vector.broadcast %cst_18 : f32 to vector<8x128xf32>
    %54 = arith.subf %53, %47 : vector<8x128xf32>
    %55 = arith.mulf %54, %52 : vector<8x128xf32>
    %56 = arith.mulf %47, %32 : vector<8x128xf32>
    %57 = arith.addf %55, %56 : vector<8x128xf32>
    %c2_i32 = arith.constant 2 : i32
    %58 = arith.truncf %57 : vector<8x128xf32> to vector<8x128xbf16>
    %cst_19 = arith.constant dense<0.000000e+00> : vector<8x512xf32>
    %59 = tpu.matmul %58, %7, %cst_19 {dimension_numbers = #tpu.dot_dimension_numbers<[1], [0], [0], [1], [0, 0, 1, 1], [], []>} : vector<8x128xbf16>, vector<128x512xbf16>, vector<8x512xf32> -> vector<8x512xf32>
    %c8_i32_20 = arith.constant 8 : i32
    %60 = arith.muli %c2_i32, %c8_i32_20 : i32
    %61 = tpu.assume_multiple %60, 8 : i32
    %62 = arith.index_cast %61 : i32 to index
    %c0_21 = arith.constant 0 : index
    %63 = vector.load %arg7[%62, %c0_21] : memref<72x512xf32, #tpu.memory_space<vmem>>, vector<8x512xf32>
    %64 = arith.addf %59, %63 : vector<8x512xf32>
    %65 = vector.extract_strided_slice %64 {offsets = [0, 0], sizes = [8, 256], strides = [1, 1]} : vector<8x512xf32> to vector<8x256xf32>
    %66 = arith.negf %65 : vector<8x256xf32>
    %67 = math.exp %66 : vector<8x256xf32>
    %cst_22 = arith.constant 1.000000e+00 : f32
    %68 = vector.broadcast %cst_22 : f32 to vector<8x256xf32>
    %69 = arith.addf %68, %67 : vector<8x256xf32>
    %70 = arith.divf %68, %69 : vector<8x256xf32>
    %71 = vector.extract_strided_slice %70 {offsets = [0, 0], sizes = [8, 128], strides = [1, 1]} : vector<8x256xf32> to vector<8x128xf32>
    %72 = vector.extract_strided_slice %70 {offsets = [0, 128], sizes = [8, 128], strides = [1, 1]} : vector<8x256xf32> to vector<8x128xf32>
    %73 = vector.extract_strided_slice %64 {offsets = [0, 384], sizes = [8, 128], strides = [1, 1]} : vector<8x512xf32> to vector<8x128xf32>
    %74 = vector.extract_strided_slice %64 {offsets = [0, 256], sizes = [8, 128], strides = [1, 1]} : vector<8x512xf32> to vector<8x128xf32>
    %75 = arith.mulf %71, %74 : vector<8x128xf32>
    %76 = arith.addf %73, %75 : vector<8x128xf32>
    %77 = math.tanh %76 : vector<8x128xf32>
    %cst_23 = arith.constant 1.000000e+00 : f32
    %78 = vector.broadcast %cst_23 : f32 to vector<8x128xf32>
    %79 = arith.subf %78, %72 : vector<8x128xf32>
    %80 = arith.mulf %79, %77 : vector<8x128xf32>
    %81 = arith.mulf %72, %57 : vector<8x128xf32>
    %82 = arith.addf %80, %81 : vector<8x128xf32>
    %c3_i32 = arith.constant 3 : i32
    %83 = arith.truncf %82 : vector<8x128xf32> to vector<8x128xbf16>
    %cst_24 = arith.constant dense<0.000000e+00> : vector<8x512xf32>
    %84 = tpu.matmul %83, %7, %cst_24 {dimension_numbers = #tpu.dot_dimension_numbers<[1], [0], [0], [1], [0, 0, 1, 1], [], []>} : vector<8x128xbf16>, vector<128x512xbf16>, vector<8x512xf32> -> vector<8x512xf32>
    %c8_i32_25 = arith.constant 8 : i32
    %85 = arith.muli %c3_i32, %c8_i32_25 : i32
    %86 = tpu.assume_multiple %85, 8 : i32
    %87 = arith.index_cast %86 : i32 to index
    %c0_26 = arith.constant 0 : index
    %88 = vector.load %arg7[%87, %c0_26] : memref<72x512xf32, #tpu.memory_space<vmem>>, vector<8x512xf32>
    %89 = arith.addf %84, %88 : vector<8x512xf32>
    %90 = vector.extract_strided_slice %89 {offsets = [0, 0], sizes = [8, 256], strides = [1, 1]} : vector<8x512xf32> to vector<8x256xf32>
    %91 = arith.negf %90 : vector<8x256xf32>
    %92 = math.exp %91 : vector<8x256xf32>
    %cst_27 = arith.constant 1.000000e+00 : f32
    %93 = vector.broadcast %cst_27 : f32 to vector<8x256xf32>
    %94 = arith.addf %93, %92 : vector<8x256xf32>
    %95 = arith.divf %93, %94 : vector<8x256xf32>
    %96 = vector.extract_strided_slice %95 {offsets = [0, 0], sizes = [8, 128], strides = [1, 1]} : vector<8x256xf32> to vector<8x128xf32>
    %97 = vector.extract_strided_slice %95 {offsets = [0, 128], sizes = [8, 128], strides = [1, 1]} : vector<8x256xf32> to vector<8x128xf32>
    %98 = vector.extract_strided_slice %89 {offsets = [0, 384], sizes = [8, 128], strides = [1, 1]} : vector<8x512xf32> to vector<8x128xf32>
    %99 = vector.extract_strided_slice %89 {offsets = [0, 256], sizes = [8, 128], strides = [1, 1]} : vector<8x512xf32> to vector<8x128xf32>
    %100 = arith.mulf %96, %99 : vector<8x128xf32>
    %101 = arith.addf %98, %100 : vector<8x128xf32>
    %102 = math.tanh %101 : vector<8x128xf32>
    %cst_28 = arith.constant 1.000000e+00 : f32
    %103 = vector.broadcast %cst_28 : f32 to vector<8x128xf32>
    %104 = arith.subf %103, %97 : vector<8x128xf32>
    %105 = arith.mulf %104, %102 : vector<8x128xf32>
    %106 = arith.mulf %97, %82 : vector<8x128xf32>
    %107 = arith.addf %105, %106 : vector<8x128xf32>
    %c4_i32 = arith.constant 4 : i32
    %108 = arith.truncf %107 : vector<8x128xf32> to vector<8x128xbf16>
    %cst_29 = arith.constant dense<0.000000e+00> : vector<8x512xf32>
    %109 = tpu.matmul %108, %7, %cst_29 {dimension_numbers = #tpu.dot_dimension_numbers<[1], [0], [0], [1], [0, 0, 1, 1], [], []>} : vector<8x128xbf16>, vector<128x512xbf16>, vector<8x512xf32> -> vector<8x512xf32>
    %c8_i32_30 = arith.constant 8 : i32
    %110 = arith.muli %c4_i32, %c8_i32_30 : i32
    %111 = tpu.assume_multiple %110, 8 : i32
    %112 = arith.index_cast %111 : i32 to index
    %c0_31 = arith.constant 0 : index
    %113 = vector.load %arg7[%112, %c0_31] : memref<72x512xf32, #tpu.memory_space<vmem>>, vector<8x512xf32>
    %114 = arith.addf %109, %113 : vector<8x512xf32>
    %115 = vector.extract_strided_slice %114 {offsets = [0, 0], sizes = [8, 256], strides = [1, 1]} : vector<8x512xf32> to vector<8x256xf32>
    %116 = arith.negf %115 : vector<8x256xf32>
    %117 = math.exp %116 : vector<8x256xf32>
    %cst_32 = arith.constant 1.000000e+00 : f32
    %118 = vector.broadcast %cst_32 : f32 to vector<8x256xf32>
    %119 = arith.addf %118, %117 : vector<8x256xf32>
    %120 = arith.divf %118, %119 : vector<8x256xf32>
    %121 = vector.extract_strided_slice %120 {offsets = [0, 0], sizes = [8, 128], strides = [1, 1]} : vector<8x256xf32> to vector<8x128xf32>
    %122 = vector.extract_strided_slice %120 {offsets = [0, 128], sizes = [8, 128], strides = [1, 1]} : vector<8x256xf32> to vector<8x128xf32>
    %123 = vector.extract_strided_slice %114 {offsets = [0, 384], sizes = [8, 128], strides = [1, 1]} : vector<8x512xf32> to vector<8x128xf32>
    %124 = vector.extract_strided_slice %114 {offsets = [0, 256], sizes = [8, 128], strides = [1, 1]} : vector<8x512xf32> to vector<8x128xf32>
    %125 = arith.mulf %121, %124 : vector<8x128xf32>
    %126 = arith.addf %123, %125 : vector<8x128xf32>
    %127 = math.tanh %126 : vector<8x128xf32>
    %cst_33 = arith.constant 1.000000e+00 : f32
    %128 = vector.broadcast %cst_33 : f32 to vector<8x128xf32>
    %129 = arith.subf %128, %122 : vector<8x128xf32>
    %130 = arith.mulf %129, %127 : vector<8x128xf32>
    %131 = arith.mulf %122, %107 : vector<8x128xf32>
    %132 = arith.addf %130, %131 : vector<8x128xf32>
    %c5_i32 = arith.constant 5 : i32
    %133 = arith.truncf %132 : vector<8x128xf32> to vector<8x128xbf16>
    %cst_34 = arith.constant dense<0.000000e+00> : vector<8x512xf32>
    %134 = tpu.matmul %133, %7, %cst_34 {dimension_numbers = #tpu.dot_dimension_numbers<[1], [0], [0], [1], [0, 0, 1, 1], [], []>} : vector<8x128xbf16>, vector<128x512xbf16>, vector<8x512xf32> -> vector<8x512xf32>
    %c8_i32_35 = arith.constant 8 : i32
    %135 = arith.muli %c5_i32, %c8_i32_35 : i32
    %136 = tpu.assume_multiple %135, 8 : i32
    %137 = arith.index_cast %136 : i32 to index
    %c0_36 = arith.constant 0 : index
    %138 = vector.load %arg7[%137, %c0_36] : memref<72x512xf32, #tpu.memory_space<vmem>>, vector<8x512xf32>
    %139 = arith.addf %134, %138 : vector<8x512xf32>
    %140 = vector.extract_strided_slice %139 {offsets = [0, 0], sizes = [8, 256], strides = [1, 1]} : vector<8x512xf32> to vector<8x256xf32>
    %141 = arith.negf %140 : vector<8x256xf32>
    %142 = math.exp %141 : vector<8x256xf32>
    %cst_37 = arith.constant 1.000000e+00 : f32
    %143 = vector.broadcast %cst_37 : f32 to vector<8x256xf32>
    %144 = arith.addf %143, %142 : vector<8x256xf32>
    %145 = arith.divf %143, %144 : vector<8x256xf32>
    %146 = vector.extract_strided_slice %145 {offsets = [0, 0], sizes = [8, 128], strides = [1, 1]} : vector<8x256xf32> to vector<8x128xf32>
    %147 = vector.extract_strided_slice %145 {offsets = [0, 128], sizes = [8, 128], strides = [1, 1]} : vector<8x256xf32> to vector<8x128xf32>
    %148 = vector.extract_strided_slice %139 {offsets = [0, 384], sizes = [8, 128], strides = [1, 1]} : vector<8x512xf32> to vector<8x128xf32>
    %149 = vector.extract_strided_slice %139 {offsets = [0, 256], sizes = [8, 128], strides = [1, 1]} : vector<8x512xf32> to vector<8x128xf32>
    %150 = arith.mulf %146, %149 : vector<8x128xf32>
    %151 = arith.addf %148, %150 : vector<8x128xf32>
    %152 = math.tanh %151 : vector<8x128xf32>
    %cst_38 = arith.constant 1.000000e+00 : f32
    %153 = vector.broadcast %cst_38 : f32 to vector<8x128xf32>
    %154 = arith.subf %153, %147 : vector<8x128xf32>
    %155 = arith.mulf %154, %152 : vector<8x128xf32>
    %156 = arith.mulf %147, %132 : vector<8x128xf32>
    %157 = arith.addf %155, %156 : vector<8x128xf32>
    %c6_i32 = arith.constant 6 : i32
    %158 = arith.truncf %157 : vector<8x128xf32> to vector<8x128xbf16>
    %cst_39 = arith.constant dense<0.000000e+00> : vector<8x512xf32>
    %159 = tpu.matmul %158, %7, %cst_39 {dimension_numbers = #tpu.dot_dimension_numbers<[1], [0], [0], [1], [0, 0, 1, 1], [], []>} : vector<8x128xbf16>, vector<128x512xbf16>, vector<8x512xf32> -> vector<8x512xf32>
    %c8_i32_40 = arith.constant 8 : i32
    %160 = arith.muli %c6_i32, %c8_i32_40 : i32
    %161 = tpu.assume_multiple %160, 8 : i32
    %162 = arith.index_cast %161 : i32 to index
    %c0_41 = arith.constant 0 : index
    %163 = vector.load %arg7[%162, %c0_41] : memref<72x512xf32, #tpu.memory_space<vmem>>, vector<8x512xf32>
    %164 = arith.addf %159, %163 : vector<8x512xf32>
    %165 = vector.extract_strided_slice %164 {offsets = [0, 0], sizes = [8, 256], strides = [1, 1]} : vector<8x512xf32> to vector<8x256xf32>
    %166 = arith.negf %165 : vector<8x256xf32>
    %167 = math.exp %166 : vector<8x256xf32>
    %cst_42 = arith.constant 1.000000e+00 : f32
    %168 = vector.broadcast %cst_42 : f32 to vector<8x256xf32>
    %169 = arith.addf %168, %167 : vector<8x256xf32>
    %170 = arith.divf %168, %169 : vector<8x256xf32>
    %171 = vector.extract_strided_slice %170 {offsets = [0, 0], sizes = [8, 128], strides = [1, 1]} : vector<8x256xf32> to vector<8x128xf32>
    %172 = vector.extract_strided_slice %170 {offsets = [0, 128], sizes = [8, 128], strides = [1, 1]} : vector<8x256xf32> to vector<8x128xf32>
    %173 = vector.extract_strided_slice %164 {offsets = [0, 384], sizes = [8, 128], strides = [1, 1]} : vector<8x512xf32> to vector<8x128xf32>
    %174 = vector.extract_strided_slice %164 {offsets = [0, 256], sizes = [8, 128], strides = [1, 1]} : vector<8x512xf32> to vector<8x128xf32>
    %175 = arith.mulf %171, %174 : vector<8x128xf32>
    %176 = arith.addf %173, %175 : vector<8x128xf32>
    %177 = math.tanh %176 : vector<8x128xf32>
    %cst_43 = arith.constant 1.000000e+00 : f32
    %178 = vector.broadcast %cst_43 : f32 to vector<8x128xf32>
    %179 = arith.subf %178, %172 : vector<8x128xf32>
    %180 = arith.mulf %179, %177 : vector<8x128xf32>
    %181 = arith.mulf %172, %157 : vector<8x128xf32>
    %182 = arith.addf %180, %181 : vector<8x128xf32>
    %c7_i32 = arith.constant 7 : i32
    %183 = arith.truncf %182 : vector<8x128xf32> to vector<8x128xbf16>
    %cst_44 = arith.constant dense<0.000000e+00> : vector<8x512xf32>
    %184 = tpu.matmul %183, %7, %cst_44 {dimension_numbers = #tpu.dot_dimension_numbers<[1], [0], [0], [1], [0, 0, 1, 1], [], []>} : vector<8x128xbf16>, vector<128x512xbf16>, vector<8x512xf32> -> vector<8x512xf32>
    %c8_i32_45 = arith.constant 8 : i32
    %185 = arith.muli %c7_i32, %c8_i32_45 : i32
    %186 = tpu.assume_multiple %185, 8 : i32
    %187 = arith.index_cast %186 : i32 to index
    %c0_46 = arith.constant 0 : index
    %188 = vector.load %arg7[%187, %c0_46] : memref<72x512xf32, #tpu.memory_space<vmem>>, vector<8x512xf32>
    %189 = arith.addf %184, %188 : vector<8x512xf32>
    %190 = vector.extract_strided_slice %189 {offsets = [0, 0], sizes = [8, 256], strides = [1, 1]} : vector<8x512xf32> to vector<8x256xf32>
    %191 = arith.negf %190 : vector<8x256xf32>
    %192 = math.exp %191 : vector<8x256xf32>
    %cst_47 = arith.constant 1.000000e+00 : f32
    %193 = vector.broadcast %cst_47 : f32 to vector<8x256xf32>
    %194 = arith.addf %193, %192 : vector<8x256xf32>
    %195 = arith.divf %193, %194 : vector<8x256xf32>
    %196 = vector.extract_strided_slice %195 {offsets = [0, 0], sizes = [8, 128], strides = [1, 1]} : vector<8x256xf32> to vector<8x128xf32>
    %197 = vector.extract_strided_slice %195 {offsets = [0, 128], sizes = [8, 128], strides = [1, 1]} : vector<8x256xf32> to vector<8x128xf32>
    %198 = vector.extract_strided_slice %189 {offsets = [0, 384], sizes = [8, 128], strides = [1, 1]} : vector<8x512xf32> to vector<8x128xf32>
    %199 = vector.extract_strided_slice %189 {offsets = [0, 256], sizes = [8, 128], strides = [1, 1]} : vector<8x512xf32> to vector<8x128xf32>
    %200 = arith.mulf %196, %199 : vector<8x128xf32>
    %201 = arith.addf %198, %200 : vector<8x128xf32>
    %202 = math.tanh %201 : vector<8x128xf32>
    %cst_48 = arith.constant 1.000000e+00 : f32
    %203 = vector.broadcast %cst_48 : f32 to vector<8x128xf32>
    %204 = arith.subf %203, %197 : vector<8x128xf32>
    %205 = arith.mulf %204, %202 : vector<8x128xf32>
    %206 = arith.mulf %197, %182 : vector<8x128xf32>
    %207 = arith.addf %205, %206 : vector<8x128xf32>
    %c8_i32_49 = arith.constant 8 : i32
    %208 = arith.truncf %207 : vector<8x128xf32> to vector<8x128xbf16>
    %cst_50 = arith.constant dense<0.000000e+00> : vector<8x512xf32>
    %209 = tpu.matmul %208, %7, %cst_50 {dimension_numbers = #tpu.dot_dimension_numbers<[1], [0], [0], [1], [0, 0, 1, 1], [], []>} : vector<8x128xbf16>, vector<128x512xbf16>, vector<8x512xf32> -> vector<8x512xf32>
    %c8_i32_51 = arith.constant 8 : i32
    %210 = arith.muli %c8_i32_49, %c8_i32_51 : i32
    %211 = tpu.assume_multiple %210, 8 : i32
    %212 = arith.index_cast %211 : i32 to index
    %c0_52 = arith.constant 0 : index
    %213 = vector.load %arg7[%212, %c0_52] : memref<72x512xf32, #tpu.memory_space<vmem>>, vector<8x512xf32>
    %214 = arith.addf %209, %213 : vector<8x512xf32>
    %215 = vector.extract_strided_slice %214 {offsets = [0, 0], sizes = [8, 256], strides = [1, 1]} : vector<8x512xf32> to vector<8x256xf32>
    %216 = arith.negf %215 : vector<8x256xf32>
    %217 = math.exp %216 : vector<8x256xf32>
    %cst_53 = arith.constant 1.000000e+00 : f32
    %218 = vector.broadcast %cst_53 : f32 to vector<8x256xf32>
    %219 = arith.addf %218, %217 : vector<8x256xf32>
    %220 = arith.divf %218, %219 : vector<8x256xf32>
    %221 = vector.extract_strided_slice %220 {offsets = [0, 0], sizes = [8, 128], strides = [1, 1]} : vector<8x256xf32> to vector<8x128xf32>
    %222 = vector.extract_strided_slice %220 {offsets = [0, 128], sizes = [8, 128], strides = [1, 1]} : vector<8x256xf32> to vector<8x128xf32>
    %223 = vector.extract_strided_slice %214 {offsets = [0, 384], sizes = [8, 128], strides = [1, 1]} : vector<8x512xf32> to vector<8x128xf32>
    %224 = vector.extract_strided_slice %214 {offsets = [0, 256], sizes = [8, 128], strides = [1, 1]} : vector<8x512xf32> to vector<8x128xf32>
    %225 = arith.mulf %221, %224 : vector<8x128xf32>
    %226 = arith.addf %223, %225 : vector<8x128xf32>
    %227 = math.tanh %226 : vector<8x128xf32>
    %cst_54 = arith.constant 1.000000e+00 : f32
    %228 = vector.broadcast %cst_54 : f32 to vector<8x128xf32>
    %229 = arith.subf %228, %222 : vector<8x128xf32>
    %230 = arith.mulf %229, %227 : vector<8x128xf32>
    %231 = arith.mulf %222, %207 : vector<8x128xf32>
    %232 = arith.addf %230, %231 : vector<8x128xf32>
    %c8_i32_55 = arith.constant 8 : i32
    %233 = arith.truncf %232 : vector<8x128xf32> to vector<8x128xbf16>
    %c0_56 = arith.constant 0 : index
    %c0_57 = arith.constant 0 : index
    %234 = vector.load %arg4[%c0_56, %c0_57] : memref<128x128xbf16, #tpu.memory_space<vmem>>, vector<128x128xbf16>
    %cst_58 = arith.constant dense<0.000000e+00> : vector<8x128xf32>
    %235 = tpu.matmul %233, %234, %cst_58 {dimension_numbers = #tpu.dot_dimension_numbers<[1], [0], [0], [1], [0, 0, 1, 1], [], []>} : vector<8x128xbf16>, vector<128x128xbf16>, vector<8x128xf32> -> vector<8x128xf32>
    %c0_59 = arith.constant 0 : index
    %c0_60 = arith.constant 0 : index
    %236 = vector.load %arg5[%c0_59, %c0_60] : memref<1x128xf32, #tpu.memory_space<vmem>>, vector<1x128xf32>
    %237 = vector.broadcast %236 : vector<1x128xf32> to vector<8x128xf32>
    %238 = arith.addf %235, %237 : vector<8x128xf32>
    %c0_61 = arith.constant 0 : index
    %c0_62 = arith.constant 0 : index
    %239 = vector.load %arg6[%c0_61, %c0_62] : memref<8x128xf32, #tpu.memory_space<vmem>>, vector<8x128xf32>
    tpu.vector_store %arg6[%c0_61, %c0_62], %238 {strides = array<i32>} : memref<8x128xf32, #tpu.memory_space<vmem>>, vector<8x128xf32>,
    return
  }
}

</mosaic_0001>

<llo_original>
// kernel: tpu_custom_call.1
$region0: #{tpu_custom_call.1}
  #allocation0 [shape = 'u32[]', space=smem, size = 0x4, offset = 0x4, fixed_abs, tag = 'smem constant byte address 0x4 - core index']
  #allocation1 [shape = 'u32[144,128]{1,0:T(1,128)}', space=vmem, size = 0x12000, scoped, tag = 'internal scratch']
  #allocation2 [shape = 'f32[72,512]{1,0:T(8,128)}', space=vmem, size = 0x24000, scoped, tag = 'scratch operand']
  %s0 = inlined_call_operand.vmem [shape: bf16[72,8], index: 0, kind: input, shape index: {}]
  %s1 = inlined_call_operand.vmem [shape: bf16[8,512], index: 1, kind: input, shape index: {}]
  %s2 = inlined_call_operand.vmem [shape: f32[1,512], index: 2, kind: input, shape index: {}]
  %s3 = inlined_call_operand.hbm [shape: bf16[128,512], index: 3, kind: input, shape index: {}]
  %s4 = inlined_call_operand.hbm [shape: bf16[128,128], index: 4, kind: input, shape index: {}]
  %s5 = inlined_call_operand.vmem [shape: f32[1,128], index: 5, kind: input, shape index: {}]
  %s6 = inlined_call_operand.hbm [shape: f32[8,128], index: 6, kind: output, shape index: {}]
  %s7 = sld [smem:[#allocation0]]
  $region42: #{tpu_custom_call.1} parent=0
    _
  %s9 = ssub.s32 1, %s7
  %s10 = scalar_select 0, %s9, %s7
  $region1: #{tpu_custom_call.1} parent=0
    #allocation3 [shape = 'u8[131072]{0}', space=vmem, size = 0x20000, scoped, tag = 'input window, operand 3, single buffered']
    #allocation4 [shape = 's32[1]{0}', space=sflag, size = 0x4, scoped, tag = 'scoped memory for tpu_custom_call.1']
    #allocation5 [shape = 's32[1]{0}', space=sflag, size = 0x4, scoped, tag = 'scoped memory for tpu_custom_call.1']
    #allocation6 [shape = 'u8[32768]{0}', space=vmem, size = 0x8000, scoped, tag = 'input window, operand 4, single buffered']
    #allocation7 [shape = 's32[1]{0}', space=sflag, size = 0x4, scoped, tag = 'scoped memory for tpu_custom_call.1']
    #allocation8 [shape = 'u8[4096]{0}', space=vmem, size = 0x1000, scoped, tag = 'output window, operand 0, single buffered']
    %11 = vsyncpa [#allocation4], 0
    %12 = vsyncpa [#allocation7], 0
    %13 = vsyncpa [#allocation5], 0
    // Predicated region
    $region2: #{tpu_custom_call.1} parent=1 // pred_check
      _
    $region3: #{tpu_custom_call.1} parent=1 // pred_check_branch
      %15 = sbr.rel (0) target = $region5
    $region4: #{tpu_custom_call.1} parent=1 // pred_region
      _
    $region5: #{tpu_custom_call.1} parent=1 // pred_fallthru
      _
    // Predicated region
    $region6: #{tpu_custom_call.1} parent=1 // pred_check
      _
    $region7: #{tpu_custom_call.1} parent=1 // pred_check_branch
      %17 = sbr.rel (0) target = $region9
    $region8: #{tpu_custom_call.1} parent=1 // pred_region
      _
    $region9: #{tpu_custom_call.1} parent=1 // pred_fallthru
      _
    // Predicated region
    $region10: #{tpu_custom_call.1} parent=1 // pred_check
      _
    $region11: #{tpu_custom_call.1} parent=1 // pred_check_branch
      %19 = sbr.rel (0) target = $region13
    $region12: #{tpu_custom_call.1} parent=1 // pred_region
      _
    $region13: #{tpu_custom_call.1} parent=1 // pred_fallthru
      _
    // Predicated region
    $region14: #{tpu_custom_call.1} parent=1 // pred_check
      _
    $region15: #{tpu_custom_call.1} parent=1 // pred_check_branch
      %21 = sbr.rel (0) target = $region17
    $region16: #{tpu_custom_call.1} parent=1 // pred_region
      %s23 = ssub.s32 4096, 4096
      %24 = vsyncadd [#allocation4], %s23
      %s25 = sshll.u32 [#allocation3], 4
      %s26 = int_to_ptr.vmem [resolvable:$true] %s25
      %31 = dma.hbm_to_vmem [thread:$0]  %s3, 4096, %s26, [#allocation4], 256, 256, 16
    $region17: #{tpu_custom_call.1} parent=1 // pred_fallthru
      _
    // Predicated region
    $region18: #{tpu_custom_call.1} parent=1 // pred_check
      _
    $region19: #{tpu_custom_call.1} parent=1 // pred_check_branch
      %33 = sbr.rel (0) target = $region21
    $region20: #{tpu_custom_call.1} parent=1 // pred_region
      %s35 = ssub.s32 1024, 1024
      %36 = vsyncadd [#allocation7], %s35
      %s37 = sshll.u32 [#allocation6], 4
      %s38 = int_to_ptr.vmem [resolvable:$true] %s37
      %43 = dma.hbm_to_vmem [thread:$0]  %s4, 1024, %s38, [#allocation7], 64, 64, 4
    $region21: #{tpu_custom_call.1} parent=1 // pred_fallthru
      _
    // Predicated region
    $region22: #{tpu_custom_call.1} parent=1 // pred_check
      _
    $region23: #{tpu_custom_call.1} parent=1 // pred_check_branch
      %45 = sbr.rel (0) target = $region25
    $region24: #{tpu_custom_call.1} parent=1 // pred_region
      _
    $region25: #{tpu_custom_call.1} parent=1 // pred_fallthru
      _
    // Predicated region
    $region26: #{tpu_custom_call.1} parent=1 // pred_check
      _
    $region27: #{tpu_custom_call.1} parent=1 // pred_check_branch
      %47 = sbr.rel (0) target = $region29
    $region28: #{tpu_custom_call.1} parent=1 // pred_region
      %48 = dma.done [#allocation4], 4096
    $region29: #{tpu_custom_call.1} parent=1 // pred_fallthru
      _
    // Predicated region
    $region30: #{tpu_custom_call.1} parent=1 // pred_check
      _
    $region31: #{tpu_custom_call.1} parent=1 // pred_check_branch
      %50 = sbr.rel (0) target = $region33
    $region32: #{tpu_custom_call.1} parent=1 // pred_region
      %51 = dma.done [#allocation7], 1024
    $region33: #{tpu_custom_call.1} parent=1 // pred_fallthru
      _
    %v53 = vld [vmem:[%s0] sm:$0xf]
    %v54 = vld [vmem:[%s0 + $0x4] sm:$0xf]
    %v55 = vld [vmem:[%s0 + $0x8] sm:$0xf]
    %v56 = vld [vmem:[%s0 + $0xc] sm:$0xf]
    %v57 = vld [vmem:[%s0 + $0x10] sm:$0xf]
    %v58 = vld [vmem:[%s0 + $0x14] sm:$0xf]
    %v59 = vld [vmem:[%s0 + $0x18] sm:$0xf]
    %v60 = vld [vmem:[%s0 + $0x1c] sm:$0xf]
    %v61 = vld [vmem:[%s0 + $0x20] sm:$0xf]
    %v62 = vld [vmem:[%s1] sm:$0xff]
    %v63 = vld [vmem:[%s1 + $0x8] sm:$0xff]
    %v64 = vld [vmem:[%s2] sm:$0xf]
    %v66 = vlaneseq
    %v67 = vshrl.u32 %v66, 7
    %v68 = vsub.s32 0, %v67
    %v69 = vrot.slane %v64, %v68
    %v70 = vlaneseq
    %v71 = vshrl.u32 %v70, 7
    %v72 = vsub.s32 1, %v71
    %v73 = vrot.slane %v64, %v72
    %v74 = vlaneseq
    %v75 = vshrl.u32 %v74, 7
    %v76 = vsub.s32 2, %v75
    %v77 = vrot.slane %v64, %v76
    %v78 = vlaneseq
    %v79 = vshrl.u32 %v78, 7
    %v80 = vsub.s32 3, %v79
    %v81 = vrot.slane %v64, %v80
    %v95 = vunpack.c.l.b16 %v53
    %v96 = vunpack.c.l.b16 %v54
    %v97 = vunpack.c.l.b16 %v55
    %v98 = vunpack.c.l.b16 %v56
    %v99 = vunpack.c.l.b16 %v57
    %v100 = vunpack.c.l.b16 %v58
    %v101 = vunpack.c.l.b16 %v59
    %v102 = vunpack.c.l.b16 %v60
    %v103 = vunpack.c.l.b16 %v61
    %v104 = vpack.c.b16 %v96, %v95
    %v105 = vpack.c.b16 %v98, %v97
    %v106 = vpack.c.b16 %v100, %v99
    %v107 = vpack.c.b16 %v102, %v101
    %v108 = vpack.c.b16 %v103, %v103
    %v111 = vunpack.c.l.b16 %v62
    %v112 = vunpack.c.h.b16 %v62
    %v113 = vunpack.c.l.b16 %v63
    %v114 = vunpack.c.h.b16 %v63
    %v115 = vpack.c.b16 %v111, %v111
    %v116 = vpack.c.b16 %v112, %v112
    %v117 = vpack.c.b16 %v113, %v113
    %v118 = vpack.c.b16 %v114, %v114
    %vm119 = vcmask 64512
    %v121 = vsel %vm119, %v104, 0
    %v124 = vsel %vm119, %v105, 0
    %v127 = vsel %vm119, %v106, 0
    %v130 = vsel %vm119, %v107, 0
    %v133 = vsel %vm119, %v108, 0
    %vm135 = vcmask 1043456
    %v137 = vsel %vm135, %v115, 0
    %v140 = vsel %vm135, %v116, 0
    %v143 = vsel %vm135, %v117, 0
    %v146 = vsel %vm135, %v118, 0
    %148 = vmatprep.subr.bf16.mxu0 0
    %149 = vmatpush1.bf16.msra.mxu0 0
    %150 = vmatprep.subr.bf16.mxu0 0
    %151 = vmatpush1.bf16.msra.mxu0 0
    %152 = vmatprep.subr.bf16.mxu0 0
    %153 = vmatpush1.bf16.msra.mxu0 0
    %154 = vmatprep.subr.bf16.mxu0 0
    %155 = vmatpush1.bf16.msra.mxu0 0
    %156 = vmatprep.subr.bf16.mxu0 0
    %157 = vmatpush1.bf16.msra.mxu0 0
    %158 = vmatprep.subr.bf16.mxu0 0
    %159 = vmatpush1.bf16.msra.mxu0 0
    %160 = vmatprep.subr.bf16.mxu0 0
    %161 = vmatpush1.bf16.msra.mxu0 0
    %162 = vmatprep.subr.bf16.mxu0 %v140
    %163 = vmatpush1.bf16.msra.mxu0 %v137
    %164 = vmatprep.subr.bf16.mxu0 0
    %165 = vmatpush2.bf16.msra.mxu0 0
    %166 = vmatprep.subr.bf16.mxu0 0
    %167 = vmatpush2.bf16.msra.mxu0 0
    %168 = vmatprep.subr.bf16.mxu0 0
    %169 = vmatpush2.bf16.msra.mxu0 0
    %170 = vmatprep.subr.bf16.mxu0 0
    %171 = vmatpush2.bf16.msra.mxu0 0
    %172 = vmatprep.subr.bf16.mxu0 0
    %173 = vmatpush2.bf16.msra.mxu0 0
    %174 = vmatprep.subr.bf16.mxu0 0
    %175 = vmatpush2.bf16.msra.mxu0 0
    %176 = vmatprep.subr.bf16.mxu0 0
    %177 = vmatpush2.bf16.msra.mxu0 0
    %178 = vmatprep.subr.bf16.mxu0 0
    %179 = vmatpush2.bf16.msra.mxu0 0
    %180 = vmatprep.mubr.bf16.mxu0 0
    %181 = vmatmul.mubr.bf16.gmra.mxu0 %v121
    %v182 = vpop.f32.mrf.mxu0
    %v183 = vadd.f32 %v69, %v182
    %v184 = vpop.f32.mrf.mxu0
    %v185 = vadd.f32 %v73, %v184
    %v186 = vpop.f32.mrf.mxu0
    %v187 = vadd.f32 %v69, %v186
    %v188 = vpop.f32.mrf.mxu0
    %v189 = vadd.f32 %v73, %v188
    %190 = vmatprep.mubr.bf16.mxu0 0
    %191 = vmatmul.mubr.bf16.gmra.mxu0 %v124
    %v192 = vpop.f32.mrf.mxu0
    %v193 = vadd.f32 %v69, %v192
    %v194 = vpop.f32.mrf.mxu0
    %v195 = vadd.f32 %v73, %v194
    %v196 = vpop.f32.mrf.mxu0
    %v197 = vadd.f32 %v69, %v196
    %v198 = vpop.f32.mrf.mxu0
    %v199 = vadd.f32 %v73, %v198
    %200 = vmatprep.mubr.bf16.mxu0 0
    %201 = vmatmul.mubr.bf16.gmra.mxu0 %v127
    %v202 = vpop.f32.mrf.mxu0
    %v203 = vadd.f32 %v69, %v202
    %v204 = vpop.f32.mrf.mxu0
    %v205 = vadd.f32 %v73, %v204
    %v206 = vpop.f32.mrf.mxu0
    %v207 = vadd.f32 %v69, %v206
    %v208 = vpop.f32.mrf.mxu0
    %v209 = vadd.f32 %v73, %v208
    %210 = vmatprep.mubr.bf16.mxu0 0
    %211 = vmatmul.mubr.bf16.gmra.mxu0 %v130
    %v212 = vpop.f32.mrf.mxu0
    %v213 = vadd.f32 %v69, %v212
    %v214 = vpop.f32.mrf.mxu0
    %v215 = vadd.f32 %v73, %v214
    %v216 = vpop.f32.mrf.mxu0
    %v217 = vadd.f32 %v69, %v216
    %v218 = vpop.f32.mrf.mxu0
    %v219 = vadd.f32 %v73, %v218
    %220 = vmatprep.mubr.bf16.mxu0 0
    %221 = vmatmul.mubr.bf16.gmra.mxu0 %v133
    %v222 = vpop.f32.mrf.mxu0
    %v223 = vadd.f32 %v69, %v222
    %v224 = vpop.f32.mrf.mxu0
    %v225 = vadd.f32 %v73, %v224
    %v226 = vpop.f32.mrf.mxu0
    %v227 = vpop.f32.mrf.mxu0
    %228 = vdwg.mxu0
    %229 = vmatprep.subr.bf16.mxu0 0
    %230 = vmatpush1.bf16.msra.mxu0 0
    %231 = vmatprep.subr.bf16.mxu0 0
    %232 = vmatpush1.bf16.msra.mxu0 0
    %233 = vmatprep.subr.bf16.mxu0 0
    %234 = vmatpush1.bf16.msra.mxu0 0
    %235 = vmatprep.subr.bf16.mxu0 0
    %236 = vmatpush1.bf16.msra.mxu0 0
    %237 = vmatprep.subr.bf16.mxu0 0
    %238 = vmatpush1.bf16.msra.mxu0 0
    %239 = vmatprep.subr.bf16.mxu0 0
    %240 = vmatpush1.bf16.msra.mxu0 0
    %241 = vmatprep.subr.bf16.mxu0 0
    %242 = vmatpush1.bf16.msra.mxu0 0
    %243 = vmatprep.subr.bf16.mxu0 %v146
    %244 = vmatpush1.bf16.msra.mxu0 %v143
    %245 = vmatprep.subr.bf16.mxu0 0
    %246 = vmatpush2.bf16.msra.mxu0 0
    %247 = vmatprep.subr.bf16.mxu0 0
    %248 = vmatpush2.bf16.msra.mxu0 0
    %249 = vmatprep.subr.bf16.mxu0 0
    %250 = vmatpush2.bf16.msra.mxu0 0
    %251 = vmatprep.subr.bf16.mxu0 0
    %252 = vmatpush2.bf16.msra.mxu0 0
    %253 = vmatprep.subr.bf16.mxu0 0
    %254 = vmatpush2.bf16.msra.mxu0 0
    %255 = vmatprep.subr.bf16.mxu0 0
    %256 = vmatpush2.bf16.msra.mxu0 0
    %257 = vmatprep.subr.bf16.mxu0 0
    %258 = vmatpush2.bf16.msra.mxu0 0
    %259 = vmatprep.subr.bf16.mxu0 0
    %260 = vmatpush2.bf16.msra.mxu0 0
    %261 = vmatprep.mubr.bf16.mxu0 0
    %262 = vmatmul.mubr.bf16.gmra.mxu0 %v121
    %v263 = vpop.f32.mrf.mxu0
    %v264 = vadd.f32 %v77, %v263
    %v265 = vpop.f32.mrf.mxu0
    %v266 = vadd.f32 %v81, %v265
    %v267 = vpop.f32.mrf.mxu0
    %v268 = vadd.f32 %v77, %v267
    %v269 = vpop.f32.mrf.mxu0
    %v270 = vadd.f32 %v81, %v269
    %271 = vmatprep.mubr.bf16.mxu0 0
    %272 = vmatmul.mubr.bf16.gmra.mxu0 %v124
    %v273 = vpop.f32.mrf.mxu0
    %v274 = vadd.f32 %v77, %v273
    %v275 = vpop.f32.mrf.mxu0
    %v276 = vadd.f32 %v81, %v275
    %v277 = vpop.f32.mrf.mxu0
    %v278 = vadd.f32 %v77, %v277
    %v279 = vpop.f32.mrf.mxu0
    %v280 = vadd.f32 %v81, %v279
    %281 = vmatprep.mubr.bf16.mxu0 0
    %282 = vmatmul.mubr.bf16.gmra.mxu0 %v127
    %v283 = vpop.f32.mrf.mxu0
    %v284 = vadd.f32 %v77, %v283
    %v285 = vpop.f32.mrf.mxu0
    %v286 = vadd.f32 %v81, %v285
    %v287 = vpop.f32.mrf.mxu0
    %v288 = vadd.f32 %v77, %v287
    %v289 = vpop.f32.mrf.mxu0
    %v290 = vadd.f32 %v81, %v289
    %291 = vmatprep.mubr.bf16.mxu0 0
    %292 = vmatmul.mubr.bf16.gmra.mxu0 %v130
    %v293 = vpop.f32.mrf.mxu0
    %v294 = vadd.f32 %v77, %v293
    %v295 = vpop.f32.mrf.mxu0
    %v296 = vadd.f32 %v81, %v295
    %v297 = vpop.f32.mrf.mxu0
    %v298 = vadd.f32 %v77, %v297
    %v299 = vpop.f32.mrf.mxu0
    %v300 = vadd.f32 %v81, %v299
    %301 = vmatprep.mubr.bf16.mxu0 0
    %302 = vmatmul.mubr.bf16.gmra.mxu0 %v133
    %v303 = vpop.f32.mrf.mxu0
    %v304 = vadd.f32 %v77, %v303
    %v305 = vpop.f32.mrf.mxu0
    %v306 = vadd.f32 %v81, %v305
    %v307 = vpop.f32.mrf.mxu0
    %v308 = vpop.f32.mrf.mxu0
    %309 = vdwg.mxu0
    %310 = vst [vmem:[#allocation2] sm:$0xff] %v183
    %311 = vst [vmem:[#allocation2 + $0x8] sm:$0xff] %v185
    %312 = vst [vmem:[#allocation2 + $0x10] sm:$0xff] %v264
    %313 = vst [vmem:[#allocation2 + $0x18] sm:$0xff] %v266
    %314 = vst [vmem:[#allocation2 + $0x20] sm:$0xff] %v187
    %315 = vst [vmem:[#allocation2 + $0x28] sm:$0xff] %v189
    %316 = vst [vmem:[#allocation2 + $0x30] sm:$0xff] %v268
    %317 = vst [vmem:[#allocation2 + $0x38] sm:$0xff] %v270
    %318 = vst [vmem:[#allocation2 + $0x40] sm:$0xff] %v193
    %319 = vst [vmem:[#allocation2 + $0x48] sm:$0xff] %v195
    %320 = vst [vmem:[#allocation2 + $0x50] sm:$0xff] %v274
    %321 = vst [vmem:[#allocation2 + $0x58] sm:$0xff] %v276
    %322 = vst [vmem:[#allocation2 + $0x60] sm:$0xff] %v197
    %323 = vst [vmem:[#allocation2 + $0x68] sm:$0xff] %v199
    %324 = vst [vmem:[#allocation2 + $0x70] sm:$0xff] %v278
    %325 = vst [vmem:[#allocation2 + $0x78] sm:$0xff] %v280
    %326 = vst [vmem:[#allocation2 + $0x80] sm:$0xff] %v203
    %327 = vst [vmem:[#allocation2 + $0x88] sm:$0xff] %v205
    %328 = vst [vmem:[#allocation2 + $0x90] sm:$0xff] %v284
    %329 = vst [vmem:[#allocation2 + $0x98] sm:$0xff] %v286
    %330 = vst [vmem:[#allocation2 + $0xa0] sm:$0xff] %v207
    %331 = vst [vmem:[#allocation2 + $0xa8] sm:$0xff] %v209
    %332 = vst [vmem:[#allocation2 + $0xb0] sm:$0xff] %v288
    %333 = vst [vmem:[#allocation2 + $0xb8] sm:$0xff] %v290
    %334 = vst [vmem:[#allocation2 + $0xc0] sm:$0xff] %v213
    %335 = vst [vmem:[#allocation2 + $0xc8] sm:$0xff] %v215
    %336 = vst [vmem:[#allocation2 + $0xd0] sm:$0xff] %v294
    %337 = vst [vmem:[#allocation2 + $0xd8] sm:$0xff] %v296
    %338 = vst [vmem:[#allocation2 + $0xe0] sm:$0xff] %v217
    %339 = vst [vmem:[#allocation2 + $0xe8] sm:$0xff] %v219
    %340 = vst [vmem:[#allocation2 + $0xf0] sm:$0xff] %v298
    %341 = vst [vmem:[#allocation2 + $0xf8] sm:$0xff] %v300
    %342 = vst [vmem:[#allocation2 + $0x100] sm:$0xff] %v223
    %343 = vst [vmem:[#allocation2 + $0x108] sm:$0xff] %v225
    %344 = vst [vmem:[#allocation2 + $0x110] sm:$0xff] %v304
    %345 = vst [vmem:[#allocation2 + $0x118] sm:$0xff] %v306
    %v346 = vld [vmem:[#allocation3] sm:$0xff]
    %v347 = vld [vmem:[#allocation3 + $0x8] sm:$0xff]
    %v348 = vld [vmem:[#allocation3 + $0x10] sm:$0xff]
    %v349 = vld [vmem:[#allocation3 + $0x18] sm:$0xff]
    %v350 = vld [vmem:[#allocation3 + $0x20] sm:$0xff]
    %v351 = vld [vmem:[#allocation3 + $0x28] sm:$0xff]
    %v352 = vld [vmem:[#allocation3 + $0x30] sm:$0xff]
    %v353 = vld [vmem:[#allocation3 + $0x38] sm:$0xff]
    %v354 = vld [vmem:[#allocation3 + $0x40] sm:$0xff]
    %v355 = vld [vmem:[#allocation3 + $0x48] sm:$0xff]
    %v356 = vld [vmem:[#allocation3 + $0x50] sm:$0xff]
    %v357 = vld [vmem:[#allocation3 + $0x58] sm:$0xff]
    %v358 = vld [vmem:[#allocation3 + $0x60] sm:$0xff]
    %v359 = vld [vmem:[#allocation3 + $0x68] sm:$0xff]
    %v360 = vld [vmem:[#allocation3 + $0x70] sm:$0xff]
    %v361 = vld [vmem:[#allocation3 + $0x78] sm:$0xff]
    %v362 = vld [vmem:[#allocation3 + $0x80] sm:$0xff]
    %v363 = vld [vmem:[#allocation3 + $0x88] sm:$0xff]
    %v364 = vld [vmem:[#allocation3 + $0x90] sm:$0xff]
    %v365 = vld [vmem:[#allocation3 + $0x98] sm:$0xff]
    %v366 = vld [vmem:[#allocation3 + $0xa0] sm:$0xff]
    %v367 = vld [vmem:[#allocation3 + $0xa8] sm:$0xff]
    %v368 = vld [vmem:[#allocation3 + $0xb0] sm:$0xff]
    %v369 = vld [vmem:[#allocation3 + $0xb8] sm:$0xff]
    %v370 = vld [vmem:[#allocation3 + $0xc0] sm:$0xff]
    %v371 = vld [vmem:[#allocation3 + $0xc8] sm:$0xff]
    %v372 = vld [vmem:[#allocation3 + $0xd0] sm:$0xff]
    %v373 = vld [vmem:[#allocation3 + $0xd8] sm:$0xff]
    %v374 = vld [vmem:[#allocation3 + $0xe0] sm:$0xff]
    %v375 = vld [vmem:[#allocation3 + $0xe8] sm:$0xff]
    %v376 = vld [vmem:[#allocation3 + $0xf0] sm:$0xff]
    %v377 = vld [vmem:[#allocation3 + $0xf8] sm:$0xff]
    %v378 = vld [vmem:[#allocation2] sm:$0xff]
    %v379 = vld [vmem:[#allocation2 + $0x8] sm:$0xff]
    %v380 = vld [vmem:[#allocation2 + $0x10] sm:$0xff]
    %v381 = vld [vmem:[#allocation2 + $0x18] sm:$0xff]
    %v382 = vxor.u32 %v378, 2147483648
    %v383 = vxor.u32 %v379, 2147483648
    %v384 = vmul.f32 %v382, 1.442695
    %v385 = vpow.pop %v384
    %v386 = vmul.f32 %v383, 1.442695
    %v387 = vpow.pop %v386
    %v388 = vadd.f32 %v385, 1.0
    %v389 = vadd.f32 %v387, 1.0
    %v390 = vrcp.pop %v388
    %v391 = vmul.f32 1.0, %v390
    %v392 = vrcp.pop %v389
    %v393 = vmul.f32 1.0, %v392
    %v394 = vmul.f32 %v391, %v380
    %v395 = vadd.f32 %v381, %v394
    %v396 = vtanh.pop %v395
    %v397 = vsub.f32 1.0, %v393
    %v398 = vmul.f32 %v397, %v396
    %v399 = vmul.f32 %v393, 0.0
    %v400 = vadd.f32 %v398, %v399
    %v401 = vlaneseq
    %v402 = vand.u32 %v401, 127
    %vm403 = vcmp.lt.s32.totalorder %v402, 64
    %v404 = vsel %vm403, %v400, 0.0
    %v405 = vpack.c.bf16 %v404, %v404
    %s406 = smul.u32 1, 4
    %s407 = smul.addr %s406, 8
    %s408 = scalar_lea.vmem [#allocation2], %s407
    %v409 = vld [vmem:[%s408] sm:$0xff]
    %v410 = vld [vmem:[%s408 + $0x8] sm:$0xff]
    %v411 = vld [vmem:[%s408 + $0x10] sm:$0xff]
    %v412 = vld [vmem:[%s408 + $0x18] sm:$0xff]
    %v445 = vunpack.c.l.b16 %v346
    %v446 = vunpack.c.h.b16 %v346
    %v447 = vunpack.c.l.b16 %v347
    %v448 = vunpack.c.h.b16 %v347
    %v449 = vunpack.c.l.b16 %v348
    %v450 = vunpack.c.h.b16 %v348
    %v451 = vunpack.c.l.b16 %v349
    %v452 = vunpack.c.h.b16 %v349
    %v453 = vunpack.c.l.b16 %v350
    %v454 = vunpack.c.h.b16 %v350
    %v455 = vunpack.c.l.b16 %v351
    %v456 = vunpack.c.h.b16 %v351
    %v457 = vunpack.c.l.b16 %v352
    %v458 = vunpack.c.h.b16 %v352
    %v459 = vunpack.c.l.b16 %v353
    %v460 = vunpack.c.h.b16 %v353
    %v461 = vunpack.c.l.b16 %v354
    %v462 = vunpack.c.h.b16 %v354
    %v463 = vunpack.c.l.b16 %v355
    %v464 = vunpack.c.h.b16 %v355
    %v465 = vunpack.c.l.b16 %v356
    %v466 = vunpack.c.h.b16 %v356
    %v467 = vunpack.c.l.b16 %v357
    %v468 = vunpack.c.h.b16 %v357
    %v469 = vunpack.c.l.b16 %v358
    %v470 = vunpack.c.h.b16 %v358
    %v471 = vunpack.c.l.b16 %v359
    %v472 = vunpack.c.h.b16 %v359
    %v473 = vunpack.c.l.b16 %v360
    %v474 = vunpack.c.h.b16 %v360
    %v475 = vunpack.c.l.b16 %v361
    %v476 = vunpack.c.h.b16 %v361
    %v477 = vunpack.c.l.b16 %v362
    %v478 = vunpack.c.h.b16 %v362
    %v479 = vunpack.c.l.b16 %v363
    %v480 = vunpack.c.h.b16 %v363
    %v481 = vunpack.c.l.b16 %v364
    %v482 = vunpack.c.h.b16 %v364
    %v483 = vunpack.c.l.b16 %v365
    %v484 = vunpack.c.h.b16 %v365
    %v485 = vunpack.c.l.b16 %v366
    %v486 = vunpack.c.h.b16 %v366
    %v487 = vunpack.c.l.b16 %v367
    %v488 = vunpack.c.h.b16 %v367
    %v489 = vunpack.c.l.b16 %v368
    %v490 = vunpack.c.h.b16 %v368
    %v491 = vunpack.c.l.b16 %v369
    %v492 = vunpack.c.h.b16 %v369
    %v493 = vunpack.c.l.b16 %v370
    %v494 = vunpack.c.h.b16 %v370
    %v495 = vunpack.c.l.b16 %v371
    %v496 = vunpack.c.h.b16 %v371
    %v497 = vunpack.c.l.b16 %v372
    %v498 = vunpack.c.h.b16 %v372
    %v499 = vunpack.c.l.b16 %v373
    %v500 = vunpack.c.h.b16 %v373
    %v501 = vunpack.c.l.b16 %v374
    %v502 = vunpack.c.h.b16 %v374
    %v503 = vunpack.c.l.b16 %v375
    %v504 = vunpack.c.h.b16 %v375
    %v505 = vunpack.c.l.b16 %v376
    %v506 = vunpack.c.h.b16 %v376
    %v507 = vunpack.c.l.b16 %v377
    %v508 = vunpack.c.h.b16 %v377
    %v509 = vpack.c.b16 %v449, %v445
    %v510 = vpack.c.b16 %v450, %v446
    %v511 = vpack.c.b16 %v451, %v447
    %v512 = vpack.c.b16 %v452, %v448
    %v513 = vpack.c.b16 %v457, %v453
    %v514 = vpack.c.b16 %v458, %v454
    %v515 = vpack.c.b16 %v459, %v455
    %v516 = vpack.c.b16 %v460, %v456
    %v517 = vpack.c.b16 %v465, %v461
    %v518 = vpack.c.b16 %v466, %v462
    %v519 = vpack.c.b16 %v467, %v463
    %v520 = vpack.c.b16 %v468, %v464
    %v521 = vpack.c.b16 %v473, %v469
    %v522 = vpack.c.b16 %v474, %v470
    %v523 = vpack.c.b16 %v475, %v471
    %v524 = vpack.c.b16 %v476, %v472
    %v525 = vpack.c.b16 %v481, %v477
    %v526 = vpack.c.b16 %v482, %v478
    %v527 = vpack.c.b16 %v483, %v479
    %v528 = vpack.c.b16 %v484, %v480
    %v529 = vpack.c.b16 %v489, %v485
    %v530 = vpack.c.b16 %v490, %v486
    %v531 = vpack.c.b16 %v491, %v487
    %v532 = vpack.c.b16 %v492, %v488
    %v533 = vpack.c.b16 %v497, %v493
    %v534 = vpack.c.b16 %v498, %v494
    %v535 = vpack.c.b16 %v499, %v495
    %v536 = vpack.c.b16 %v500, %v496
    %v537 = vpack.c.b16 %v505, %v501
    %v538 = vpack.c.b16 %v506, %v502
    %v539 = vpack.c.b16 %v507, %v503
    %v540 = vpack.c.b16 %v508, %v504
    %573 = vmatprep.subr.bf16.mxu0 %v538
    %574 = vmatpush1.bf16.msra.mxu0 %v537
    %575 = vmatprep.subr.bf16.mxu0 %v534
    %576 = vmatpush1.bf16.msra.mxu0 %v533
    %577 = vmatprep.subr.bf16.mxu0 %v530
    %578 = vmatpush1.bf16.msra.mxu0 %v529
    %579 = vmatprep.subr.bf16.mxu0 %v526
    %580 = vmatpush1.bf16.msra.mxu0 %v525
    %581 = vmatprep.subr.bf16.mxu0 %v522
    %582 = vmatpush1.bf16.msra.mxu0 %v521
    %583 = vmatprep.subr.bf16.mxu0 %v518
    %584 = vmatpush1.bf16.msra.mxu0 %v517
    %585 = vmatprep.subr.bf16.mxu0 %v514
    %586 = vmatpush1.bf16.msra.mxu0 %v513
    %587 = vmatprep.subr.bf16.mxu0 %v510
    %588 = vmatpush1.bf16.msra.mxu0 %v509
    %589 = vmatprep.subr.bf16.mxu0 0
    %590 = vmatpush2.bf16.msra.mxu0 0
    %591 = vmatprep.subr.bf16.mxu0 0
    %592 = vmatpush2.bf16.msra.mxu0 0
    %593 = vmatprep.subr.bf16.mxu0 0
    %594 = vmatpush2.bf16.msra.mxu0 0
    %595 = vmatprep.subr.bf16.mxu0 0
    %596 = vmatpush2.bf16.msra.mxu0 0
    %597 = vmatprep.subr.bf16.mxu0 0
    %598 = vmatpush2.bf16.msra.mxu0 0
    %599 = vmatprep.subr.bf16.mxu0 0
    %600 = vmatpush2.bf16.msra.mxu0 0
    %601 = vmatprep.subr.bf16.mxu0 0
    %602 = vmatpush2.bf16.msra.mxu0 0
    %603 = vmatprep.subr.bf16.mxu0 0
    %604 = vmatpush2.bf16.msra.mxu0 0
    %605 = vmatprep.mubr.bf16.mxu0 0
    %606 = vmatmul.mubr.bf16.gmra.mxu0 %v405
    %v607 = vpop.f32.mrf.mxu0
    %v608 = vadd.f32 %v409, %v607
    %v609 = vpop.f32.mrf.mxu0
    %v610 = vadd.f32 %v410, %v609
    %v611 = vpop.f32.mrf.mxu0
    %v612 = vpop.f32.mrf.mxu0
    %613 = vdwg.mxu0
    %614 = vmatprep.subr.bf16.mxu0 %v540
    %615 = vmatpush1.bf16.msra.mxu0 %v539
    %616 = vmatprep.subr.bf16.mxu0 %v536
    %617 = vmatpush1.bf16.msra.mxu0 %v535
    %618 = vmatprep.subr.bf16.mxu0 %v532
    %619 = vmatpush1.bf16.msra.mxu0 %v531
    %620 = vmatprep.subr.bf16.mxu0 %v528
    %621 = vmatpush1.bf16.msra.mxu0 %v527
    %622 = vmatprep.subr.bf16.mxu0 %v524
    %623 = vmatpush1.bf16.msra.mxu0 %v523
    %624 = vmatprep.subr.bf16.mxu0 %v520
    %625 = vmatpush1.bf16.msra.mxu0 %v519
    %626 = vmatprep.subr.bf16.mxu0 %v516
    %627 = vmatpush1.bf16.msra.mxu0 %v515
    %628 = vmatprep.subr.bf16.mxu0 %v512
    %629 = vmatpush1.bf16.msra.mxu0 %v511
    %630 = vmatprep.subr.bf16.mxu0 0
    %631 = vmatpush2.bf16.msra.mxu0 0
    %632 = vmatprep.subr.bf16.mxu0 0
    %633 = vmatpush2.bf16.msra.mxu0 0
    %634 = vmatprep.subr.bf16.mxu0 0
    %635 = vmatpush2.bf16.msra.mxu0 0
    %636 = vmatprep.subr.bf16.mxu0 0
    %637 = vmatpush2.bf16.msra.mxu0 0
    %638 = vmatprep.subr.bf16.mxu0 0
    %639 = vmatpush2.bf16.msra.mxu0 0
    %640 = vmatprep.subr.bf16.mxu0 0
    %641 = vmatpush2.bf16.msra.mxu0 0
    %642 = vmatprep.subr.bf16.mxu0 0
    %643 = vmatpush2.bf16.msra.mxu0 0
    %644 = vmatprep.subr.bf16.mxu0 0
    %645 = vmatpush2.bf16.msra.mxu0 0
    %646 = vmatprep.mubr.bf16.mxu0 0
    %647 = vmatmul.mubr.bf16.gmra.mxu0 %v405
    %v648 = vpop.f32.mrf.mxu0
    %v649 = vadd.f32 %v411, %v648
    %v650 = vpop.f32.mrf.mxu0
    %v651 = vadd.f32 %v412, %v650
    %v652 = vpop.f32.mrf.mxu0
    %v653 = vpop.f32.mrf.mxu0
    %654 = vdwg.mxu0
    %v655 = vxor.u32 %v608, 2147483648
    %v656 = vxor.u32 %v610, 2147483648
    %v657 = vmul.f32 %v655, 1.442695
    %v658 = vpow.pop %v657
    %v659 = vmul.f32 %v656, 1.442695
    %v660 = vpow.pop %v659
    %v661 = vadd.f32 %v658, 1.0
    %v662 = vadd.f32 %v660, 1.0
    %v663 = vrcp.pop %v661
    %v664 = vmul.f32 1.0, %v663
    %v665 = vrcp.pop %v662
    %v666 = vmul.f32 1.0, %v665
    %v667 = vmul.f32 %v664, %v649
    %v668 = vadd.f32 %v651, %v667
    %v669 = vtanh.pop %v668
    %v670 = vsub.f32 1.0, %v666
    %v671 = vmul.f32 %v670, %v669
    %v672 = vmul.f32 %v666, %v404
    %v673 = vadd.f32 %v671, %v672
    %v674 = vpack.c.bf16 %v673, %v673
    %s675 = smul.u32 2, 4
    %s676 = smul.addr %s675, 8
    %s677 = scalar_lea.vmem [#allocation2], %s676
    %v678 = vld [vmem:[%s677] sm:$0xff]
    %v679 = vld [vmem:[%s677 + $0x8] sm:$0xff]
    %v680 = vld [vmem:[%s677 + $0x10] sm:$0xff]
    %v681 = vld [vmem:[%s677 + $0x18] sm:$0xff]
    %682 = vmatprep.subr.bf16.mxu0 %v538
    %683 = vmatpush1.bf16.msra.mxu0 %v537
    %684 = vmatprep.subr.bf16.mxu0 %v534
    %685 = vmatpush1.bf16.msra.mxu0 %v533
    %686 = vmatprep.subr.bf16.mxu0 %v530
    %687 = vmatpush1.bf16.msra.mxu0 %v529
    %688 = vmatprep.subr.bf16.mxu0 %v526
    %689 = vmatpush1.bf16.msra.mxu0 %v525
    %690 = vmatprep.subr.bf16.mxu0 %v522
    %691 = vmatpush1.bf16.msra.mxu0 %v521
    %692 = vmatprep.subr.bf16.mxu0 %v518
    %693 = vmatpush1.bf16.msra.mxu0 %v517
    %694 = vmatprep.subr.bf16.mxu0 %v514
    %695 = vmatpush1.bf16.msra.mxu0 %v513
    %696 = vmatprep.subr.bf16.mxu0 %v510
    %697 = vmatpush1.bf16.msra.mxu0 %v509
    %698 = vmatprep.subr.bf16.mxu0 0
    %699 = vmatpush2.bf16.msra.mxu0 0
    %700 = vmatprep.subr.bf16.mxu0 0
    %701 = vmatpush2.bf16.msra.mxu0 0
    %702 = vmatprep.subr.bf16.mxu0 0
    %703 = vmatpush2.bf16.msra.mxu0 0
    %704 = vmatprep.subr.bf16.mxu0 0
    %705 = vmatpush2.bf16.msra.mxu0 0
    %706 = vmatprep.subr.bf16.mxu0 0
    %707 = vmatpush2.bf16.msra.mxu0 0
    %708 = vmatprep.subr.bf16.mxu0 0
    %709 = vmatpush2.bf16.msra.mxu0 0
    %710 = vmatprep.subr.bf16.mxu0 0
    %711 = vmatpush2.bf16.msra.mxu0 0
    %712 = vmatprep.subr.bf16.mxu0 0
    %713 = vmatpush2.bf16.msra.mxu0 0
    %714 = vmatprep.mubr.bf16.mxu0 0
    %715 = vmatmul.mubr.bf16.gmra.mxu0 %v674
    %v716 = vpop.f32.mrf.mxu0
    %v717 = vadd.f32 %v678, %v716
    %v718 = vpop.f32.mrf.mxu0
    %v719 = vadd.f32 %v679, %v718
    %v720 = vpop.f32.mrf.mxu0
    %v721 = vpop.f32.mrf.mxu0
    %722 = vdwg.mxu0
    %723 = vmatprep.subr.bf16.mxu0 %v540
    %724 = vmatpush1.bf16.msra.mxu0 %v539
    %725 = vmatprep.subr.bf16.mxu0 %v536
    %726 = vmatpush1.bf16.msra.mxu0 %v535
    %727 = vmatprep.subr.bf16.mxu0 %v532
    %728 = vmatpush1.bf16.msra.mxu0 %v531
    %729 = vmatprep.subr.bf16.mxu0 %v528
    %730 = vmatpush1.bf16.msra.mxu0 %v527
    %731 = vmatprep.subr.bf16.mxu0 %v524
    %732 = vmatpush1.bf16.msra.mxu0 %v523
    %733 = vmatprep.subr.bf16.mxu0 %v520
    %734 = vmatpush1.bf16.msra.mxu0 %v519
    %735 = vmatprep.subr.bf16.mxu0 %v516
    %736 = vmatpush1.bf16.msra.mxu0 %v515
    %737 = vmatprep.subr.bf16.mxu0 %v512
    %738 = vmatpush1.bf16.msra.mxu0 %v511
    %739 = vmatprep.subr.bf16.mxu0 0
    %740 = vmatpush2.bf16.msra.mxu0 0
    %741 = vmatprep.subr.bf16.mxu0 0
    %742 = vmatpush2.bf16.msra.mxu0 0
    %743 = vmatprep.subr.bf16.mxu0 0
    %744 = vmatpush2.bf16.msra.mxu0 0
    %745 = vmatprep.subr.bf16.mxu0 0
    %746 = vmatpush2.bf16.msra.mxu0 0
    %747 = vmatprep.subr.bf16.mxu0 0
    %748 = vmatpush2.bf16.msra.mxu0 0
    %749 = vmatprep.subr.bf16.mxu0 0
    %750 = vmatpush2.bf16.msra.mxu0 0
    %751 = vmatprep.subr.bf16.mxu0 0
    %752 = vmatpush2.bf16.msra.mxu0 0
    %753 = vmatprep.subr.bf16.mxu0 0
    %754 = vmatpush2.bf16.msra.mxu0 0
    %755 = vmatprep.mubr.bf16.mxu0 0
    %756 = vmatmul.mubr.bf16.gmra.mxu0 %v674
    %v757 = vpop.f32.mrf.mxu0
    %v758 = vadd.f32 %v680, %v757
    %v759 = vpop.f32.mrf.mxu0
    %v760 = vadd.f32 %v681, %v759
    %v761 = vpop.f32.mrf.mxu0
    %v762 = vpop.f32.mrf.mxu0
    %763 = vdwg.mxu0
    %v764 = vxor.u32 %v717, 2147483648
    %v765 = vxor.u32 %v719, 2147483648
    %v766 = vmul.f32 %v764, 1.442695
    %v767 = vpow.pop %v766
    %v768 = vmul.f32 %v765, 1.442695
    %v769 = vpow.pop %v768
    %v770 = vadd.f32 %v767, 1.0
    %v771 = vadd.f32 %v769, 1.0
    %v772 = vrcp.pop %v770
    %v773 = vmul.f32 1.0, %v772
    %v774 = vrcp.pop %v771
    %v775 = vmul.f32 1.0, %v774
    %v776 = vmul.f32 %v773, %v758
    %v777 = vadd.f32 %v760, %v776
    %v778 = vtanh.pop %v777
    %v779 = vsub.f32 1.0, %v775
    %v780 = vmul.f32 %v779, %v778
    %v781 = vmul.f32 %v775, %v673
    %v782 = vadd.f32 %v780, %v781
    %v783 = vpack.c.bf16 %v782, %v782
    %s784 = smul.u32 3, 4
    %s785 = smul.addr %s784, 8
    %s786 = scalar_lea.vmem [#allocation2], %s785
    %v787 = vld [vmem:[%s786] sm:$0xff]
    %v788 = vld [vmem:[%s786 + $0x8] sm:$0xff]
    %v789 = vld [vmem:[%s786 + $0x10] sm:$0xff]
    %v790 = vld [vmem:[%s786 + $0x18] sm:$0xff]
    %791 = vmatprep.subr.bf16.mxu0 %v538
    %792 = vmatpush1.bf16.msra.mxu0 %v537
    %793 = vmatprep.subr.bf16.mxu0 %v534
    %794 = vmatpush1.bf16.msra.mxu0 %v533
    %795 = vmatprep.subr.bf16.mxu0 %v530
    %796 = vmatpush1.bf16.msra.mxu0 %v529
    %797 = vmatprep.subr.bf16.mxu0 %v526
    %798 = vmatpush1.bf16.msra.mxu0 %v525
    %799 = vmatprep.subr.bf16.mxu0 %v522
    %800 = vmatpush1.bf16.msra.mxu0 %v521
    %801 = vmatprep.subr.bf16.mxu0 %v518
    %802 = vmatpush1.bf16.msra.mxu0 %v517
    %803 = vmatprep.subr.bf16.mxu0 %v514
    %804 = vmatpush1.bf16.msra.mxu0 %v513
    %805 = vmatprep.subr.bf16.mxu0 %v510
    %806 = vmatpush1.bf16.msra.mxu0 %v509
    %807 = vmatprep.subr.bf16.mxu0 0
    %808 = vmatpush2.bf16.msra.mxu0 0
    %809 = vmatprep.subr.bf16.mxu0 0
    %810 = vmatpush2.bf16.msra.mxu0 0
    %811 = vmatprep.subr.bf16.mxu0 0
    %812 = vmatpush2.bf16.msra.mxu0 0
    %813 = vmatprep.subr.bf16.mxu0 0
    %814 = vmatpush2.bf16.msra.mxu0 0
    %815 = vmatprep.subr.bf16.mxu0 0
    %816 = vmatpush2.bf16.msra.mxu0 0
    %817 = vmatprep.subr.bf16.mxu0 0
    %818 = vmatpush2.bf16.msra.mxu0 0
    %819 = vmatprep.subr.bf16.mxu0 0
    %820 = vmatpush2.bf16.msra.mxu0 0
    %821 = vmatprep.subr.bf16.mxu0 0
    %822 = vmatpush2.bf16.msra.mxu0 0
    %823 = vmatprep.mubr.bf16.mxu0 0
    %824 = vmatmul.mubr.bf16.gmra.mxu0 %v783
    %v825 = vpop.f32.mrf.mxu0
    %v826 = vadd.f32 %v787, %v825
    %v827 = vpop.f32.mrf.mxu0
    %v828 = vadd.f32 %v788, %v827
    %v829 = vpop.f32.mrf.mxu0
    %v830 = vpop.f32.mrf.mxu0
    %831 = vdwg.mxu0
    %832 = vmatprep.subr.bf16.mxu0 %v540
    %833 = vmatpush1.bf16.msra.mxu0 %v539
    %834 = vmatprep.subr.bf16.mxu0 %v536
    %835 = vmatpush1.bf16.msra.mxu0 %v535
    %836 = vmatprep.subr.bf16.mxu0 %v532
    %837 = vmatpush1.bf16.msra.mxu0 %v531
    %838 = vmatprep.subr.bf16.mxu0 %v528
    %839 = vmatpush1.bf16.msra.mxu0 %v527
    %840 = vmatprep.subr.bf16.mxu0 %v524
    %841 = vmatpush1.bf16.msra.mxu0 %v523
    %842 = vmatprep.subr.bf16.mxu0 %v520
    %843 = vmatpush1.bf16.msra.mxu0 %v519
    %844 = vmatprep.subr.bf16.mxu0 %v516
    %845 = vmatpush1.bf16.msra.mxu0 %v515
    %846 = vmatprep.subr.bf16.mxu0 %v512
    %847 = vmatpush1.bf16.msra.mxu0 %v511
    %848 = vmatprep.subr.bf16.mxu0 0
    %849 = vmatpush2.bf16.msra.mxu0 0
    %850 = vmatprep.subr.bf16.mxu0 0
    %851 = vmatpush2.bf16.msra.mxu0 0
    %852 = vmatprep.subr.bf16.mxu0 0
    %853 = vmatpush2.bf16.msra.mxu0 0
    %854 = vmatprep.subr.bf16.mxu0 0
    %855 = vmatpush2.bf16.msra.mxu0 0
    %856 = vmatprep.subr.bf16.mxu0 0
    %857 = vmatpush2.bf16.msra.mxu0 0
    %858 = vmatprep.subr.bf16.mxu0 0
    %859 = vmatpush2.bf16.msra.mxu0 0
    %860 = vmatprep.subr.bf16.mxu0 0
    %861 = vmatpush2.bf16.msra.mxu0 0
    %862 = vmatprep.subr.bf16.mxu0 0
    %863 = vmatpush2.bf16.msra.mxu0 0
    %864 = vmatprep.mubr.bf16.mxu0 0
    %865 = vmatmul.mubr.bf16.gmra.mxu0 %v783
    %v866 = vpop.f32.mrf.mxu0
    %v867 = vadd.f32 %v789, %v866
    %v868 = vpop.f32.mrf.mxu0
    %v869 = vadd.f32 %v790, %v868
    %v870 = vpop.f32.mrf.mxu0
    %v871 = vpop.f32.mrf.mxu0
    %872 = vdwg.mxu0
    %v873 = vxor.u32 %v826, 2147483648
    %v874 = vxor.u32 %v828, 2147483648
    %v875 = vmul.f32 %v873, 1.442695
    %v876 = vpow.pop %v875
    %v877 = vmul.f32 %v874, 1.442695
    %v878 = vpow.pop %v877
    %v879 = vadd.f32 %v876, 1.0
    %v880 = vadd.f32 %v878, 1.0
    %v881 = vrcp.pop %v879
    %v882 = vmul.f32 1.0, %v881
    %v883 = vrcp.pop %v880
    %v884 = vmul.f32 1.0, %v883
    %v885 = vmul.f32 %v882, %v867
    %v886 = vadd.f32 %v869, %v885
    %v887 = vtanh.pop %v886
    %v888 = vsub.f32 1.0, %v884
    %v889 = vmul.f32 %v888, %v887
    %v890 = vmul.f32 %v884, %v782
    %v891 = vadd.f32 %v889, %v890
    %v892 = vpack.c.bf16 %v891, %v891
    %s893 = smul.u32 4, 4
    %s894 = smul.addr %s893, 8
    %s895 = scalar_lea.vmem [#allocation2], %s894
    %v896 = vld [vmem:[%s895] sm:$0xff]
    %v897 = vld [vmem:[%s895 + $0x8] sm:$0xff]
    %v898 = vld [vmem:[%s895 + $0x10] sm:$0xff]
    %v899 = vld [vmem:[%s895 + $0x18] sm:$0xff]
    %900 = vmatprep.subr.bf16.mxu0 %v538
    %901 = vmatpush1.bf16.msra.mxu0 %v537
    %902 = vmatprep.subr.bf16.mxu0 %v534
    %903 = vmatpush1.bf16.msra.mxu0 %v533
    %904 = vmatprep.subr.bf16.mxu0 %v530
    %905 = vmatpush1.bf16.msra.mxu0 %v529
    %906 = vmatprep.subr.bf16.mxu0 %v526
    %907 = vmatpush1.bf16.msra.mxu0 %v525
    %908 = vmatprep.subr.bf16.mxu0 %v522
    %909 = vmatpush1.bf16.msra.mxu0 %v521
    %910 = vmatprep.subr.bf16.mxu0 %v518
    %911 = vmatpush1.bf16.msra.mxu0 %v517
    %912 = vmatprep.subr.bf16.mxu0 %v514
    %913 = vmatpush1.bf16.msra.mxu0 %v513
    %914 = vmatprep.subr.bf16.mxu0 %v510
    %915 = vmatpush1.bf16.msra.mxu0 %v509
    %916 = vmatprep.subr.bf16.mxu0 0
    %917 = vmatpush2.bf16.msra.mxu0 0
    %918 = vmatprep.subr.bf16.mxu0 0
    %919 = vmatpush2.bf16.msra.mxu0 0
    %920 = vmatprep.subr.bf16.mxu0 0
    %921 = vmatpush2.bf16.msra.mxu0 0
    %922 = vmatprep.subr.bf16.mxu0 0
    %923 = vmatpush2.bf16.msra.mxu0 0
    %924 = vmatprep.subr.bf16.mxu0 0
    %925 = vmatpush2.bf16.msra.mxu0 0
    %926 = vmatprep.subr.bf16.mxu0 0
    %927 = vmatpush2.bf16.msra.mxu0 0
    %928 = vmatprep.subr.bf16.mxu0 0
    %929 = vmatpush2.bf16.msra.mxu0 0
    %930 = vmatprep.subr.bf16.mxu0 0
    %931 = vmatpush2.bf16.msra.mxu0 0
    %932 = vmatprep.mubr.bf16.mxu0 0
    %933 = vmatmul.mubr.bf16.gmra.mxu0 %v892
    %v934 = vpop.f32.mrf.mxu0
    %v935 = vadd.f32 %v896, %v934
    %v936 = vpop.f32.mrf.mxu0
    %v937 = vadd.f32 %v897, %v936
    %v938 = vpop.f32.mrf.mxu0
    %v939 = vpop.f32.mrf.mxu0
    %940 = vdwg.mxu0
    %941 = vmatprep.subr.bf16.mxu0 %v540
    %942 = vmatpush1.bf16.msra.mxu0 %v539
    %943 = vmatprep.subr.bf16.mxu0 %v536
    %944 = vmatpush1.bf16.msra.mxu0 %v535
    %945 = vmatprep.subr.bf16.mxu0 %v532
    %946 = vmatpush1.bf16.msra.mxu0 %v531
    %947 = vmatprep.subr.bf16.mxu0 %v528
    %948 = vmatpush1.bf16.msra.mxu0 %v527
    %949 = vmatprep.subr.bf16.mxu0 %v524
    %950 = vmatpush1.bf16.msra.mxu0 %v523
    %951 = vmatprep.subr.bf16.mxu0 %v520
    %952 = vmatpush1.bf16.msra.mxu0 %v519
    %953 = vmatprep.subr.bf16.mxu0 %v516
    %954 = vmatpush1.bf16.msra.mxu0 %v515
    %955 = vmatprep.subr.bf16.mxu0 %v512
    %956 = vmatpush1.bf16.msra.mxu0 %v511
    %957 = vmatprep.subr.bf16.mxu0 0
    %958 = vmatpush2.bf16.msra.mxu0 0
    %959 = vmatprep.subr.bf16.mxu0 0
    %960 = vmatpush2.bf16.msra.mxu0 0
    %961 = vmatprep.subr.bf16.mxu0 0
    %962 = vmatpush2.bf16.msra.mxu0 0
    %963 = vmatprep.subr.bf16.mxu0 0
    %964 = vmatpush2.bf16.msra.mxu0 0
    %965 = vmatprep.subr.bf16.mxu0 0
    %966 = vmatpush2.bf16.msra.mxu0 0
    %967 = vmatprep.subr.bf16.mxu0 0
    %968 = vmatpush2.bf16.msra.mxu0 0
    %969 = vmatprep.subr.bf16.mxu0 0
    %970 = vmatpush2.bf16.msra.mxu0 0
    %971 = vmatprep.subr.bf16.mxu0 0
    %972 = vmatpush2.bf16.msra.mxu0 0
    %973 = vmatprep.mubr.bf16.mxu0 0
    %974 = vmatmul.mubr.bf16.gmra.mxu0 %v892
    %v975 = vpop.f32.mrf.mxu0
    %v976 = vadd.f32 %v898, %v975
    %v977 = vpop.f32.mrf.mxu0
    %v978 = vadd.f32 %v899, %v977
    %v979 = vpop.f32.mrf.mxu0
    %v980 = vpop.f32.mrf.mxu0
    %981 = vdwg.mxu0
    %v982 = vxor.u32 %v935, 2147483648
    %v983 = vxor.u32 %v937, 2147483648
    %v984 = vmul.f32 %v982, 1.442695
    %v985 = vpow.pop %v984
    %v986 = vmul.f32 %v983, 1.442695
    %v987 = vpow.pop %v986
    %v988 = vadd.f32 %v985, 1.0
    %v989 = vadd.f32 %v987, 1.0
    %v990 = vrcp.pop %v988
    %v991 = vmul.f32 1.0, %v990
    %v992 = vrcp.pop %v989
    %v993 = vmul.f32 1.0, %v992
    %v994 = vmul.f32 %v991, %v976
    %v995 = vadd.f32 %v978, %v994
    %v996 = vtanh.pop %v995
    %v997 = vsub.f32 1.0, %v993
    %v998 = vmul.f32 %v997, %v996
    %v999 = vmul.f32 %v993, %v891
    %v1000 = vadd.f32 %v998, %v999
    %v1001 = vpack.c.bf16 %v1000, %v1000
    %s1002 = smul.u32 5, 4
    %s1003 = smul.addr %s1002, 8
    %s1004 = scalar_lea.vmem [#allocation2], %s1003
    %v1005 = vld [vmem:[%s1004] sm:$0xff]
    %v1006 = vld [vmem:[%s1004 + $0x8] sm:$0xff]
    %v1007 = vld [vmem:[%s1004 + $0x10] sm:$0xff]
    %v1008 = vld [vmem:[%s1004 + $0x18] sm:$0xff]
    %1009 = vmatprep.subr.bf16.mxu0 %v538
    %1010 = vmatpush1.bf16.msra.mxu0 %v537
    %1011 = vmatprep.subr.bf16.mxu0 %v534
    %1012 = vmatpush1.bf16.msra.mxu0 %v533
    %1013 = vmatprep.subr.bf16.mxu0 %v530
    %1014 = vmatpush1.bf16.msra.mxu0 %v529
    %1015 = vmatprep.subr.bf16.mxu0 %v526
    %1016 = vmatpush1.bf16.msra.mxu0 %v525
    %1017 = vmatprep.subr.bf16.mxu0 %v522
    %1018 = vmatpush1.bf16.msra.mxu0 %v521
    %1019 = vmatprep.subr.bf16.mxu0 %v518
    %1020 = vmatpush1.bf16.msra.mxu0 %v517
    %1021 = vmatprep.subr.bf16.mxu0 %v514
    %1022 = vmatpush1.bf16.msra.mxu0 %v513
    %1023 = vmatprep.subr.bf16.mxu0 %v510
    %1024 = vmatpush1.bf16.msra.mxu0 %v509
    %1025 = vmatprep.subr.bf16.mxu0 0
    %1026 = vmatpush2.bf16.msra.mxu0 0
    %1027 = vmatprep.subr.bf16.mxu0 0
    %1028 = vmatpush2.bf16.msra.mxu0 0
    %1029 = vmatprep.subr.bf16.mxu0 0
    %1030 = vmatpush2.bf16.msra.mxu0 0
    %1031 = vmatprep.subr.bf16.mxu0 0
    %1032 = vmatpush2.bf16.msra.mxu0 0
    %1033 = vmatprep.subr.bf16.mxu0 0
    %1034 = vmatpush2.bf16.msra.mxu0 0
    %1035 = vmatprep.subr.bf16.mxu0 0
    %1036 = vmatpush2.bf16.msra.mxu0 0
    %1037 = vmatprep.subr.bf16.mxu0 0
    %1038 = vmatpush2.bf16.msra.mxu0 0
    %1039 = vmatprep.subr.bf16.mxu0 0
    %1040 = vmatpush2.bf16.msra.mxu0 0
    %1041 = vmatprep.mubr.bf16.mxu0 0
    %1042 = vmatmul.mubr.bf16.gmra.mxu0 %v1001
    %v1043 = vpop.f32.mrf.mxu0
    %v1044 = vadd.f32 %v1005, %v1043
    %v1045 = vpop.f32.mrf.mxu0
    %v1046 = vadd.f32 %v1006, %v1045
    %v1047 = vpop.f32.mrf.mxu0
    %v1048 = vpop.f32.mrf.mxu0
    %1049 = vdwg.mxu0
    %1050 = vmatprep.subr.bf16.mxu0 %v540
    %1051 = vmatpush1.bf16.msra.mxu0 %v539
    %1052 = vmatprep.subr.bf16.mxu0 %v536
    %1053 = vmatpush1.bf16.msra.mxu0 %v535
    %1054 = vmatprep.subr.bf16.mxu0 %v532
    %1055 = vmatpush1.bf16.msra.mxu0 %v531
    %1056 = vmatprep.subr.bf16.mxu0 %v528
    %1057 = vmatpush1.bf16.msra.mxu0 %v527
    %1058 = vmatprep.subr.bf16.mxu0 %v524
    %1059 = vmatpush1.bf16.msra.mxu0 %v523
    %1060 = vmatprep.subr.bf16.mxu0 %v520
    %1061 = vmatpush1.bf16.msra.mxu0 %v519
    %1062 = vmatprep.subr.bf16.mxu0 %v516
    %1063 = vmatpush1.bf16.msra.mxu0 %v515
    %1064 = vmatprep.subr.bf16.mxu0 %v512
    %1065 = vmatpush1.bf16.msra.mxu0 %v511
    %1066 = vmatprep.subr.bf16.mxu0 0
    %1067 = vmatpush2.bf16.msra.mxu0 0
    %1068 = vmatprep.subr.bf16.mxu0 0
    %1069 = vmatpush2.bf16.msra.mxu0 0
    %1070 = vmatprep.subr.bf16.mxu0 0
    %1071 = vmatpush2.bf16.msra.mxu0 0
    %1072 = vmatprep.subr.bf16.mxu0 0
    %1073 = vmatpush2.bf16.msra.mxu0 0
    %1074 = vmatprep.subr.bf16.mxu0 0
    %1075 = vmatpush2.bf16.msra.mxu0 0
    %1076 = vmatprep.subr.bf16.mxu0 0
    %1077 = vmatpush2.bf16.msra.mxu0 0
    %1078 = vmatprep.subr.bf16.mxu0 0
    %1079 = vmatpush2.bf16.msra.mxu0 0
    %1080 = vmatprep.subr.bf16.mxu0 0
    %1081 = vmatpush2.bf16.msra.mxu0 0
    %1082 = vmatprep.mubr.bf16.mxu0 0
    %1083 = vmatmul.mubr.bf16.gmra.mxu0 %v1001
    %v1084 = vpop.f32.mrf.mxu0
    %v1085 = vadd.f32 %v1007, %v1084
    %v1086 = vpop.f32.mrf.mxu0
    %v1087 = vadd.f32 %v1008, %v1086
    %v1088 = vpop.f32.mrf.mxu0
    %v1089 = vpop.f32.mrf.mxu0
    %1090 = vdwg.mxu0
    %v1091 = vxor.u32 %v1044, 2147483648
    %v1092 = vxor.u32 %v1046, 2147483648
    %v1093 = vmul.f32 %v1091, 1.442695
    %v1094 = vpow.pop %v1093
    %v1095 = vmul.f32 %v1092, 1.442695
    %v1096 = vpow.pop %v1095
    %v1097 = vadd.f32 %v1094, 1.0
    %v1098 = vadd.f32 %v1096, 1.0
    %v1099 = vrcp.pop %v1097
    %v1100 = vmul.f32 1.0, %v1099
    %v1101 = vrcp.pop %v1098
    %v1102 = vmul.f32 1.0, %v1101
    %v1103 = vmul.f32 %v1100, %v1085
    %v1104 = vadd.f32 %v1087, %v1103
    %v1105 = vtanh.pop %v1104
    %v1106 = vsub.f32 1.0, %v1102
    %v1107 = vmul.f32 %v1106, %v1105
    %v1108 = vmul.f32 %v1102, %v1000
    %v1109 = vadd.f32 %v1107, %v1108
    %v1110 = vpack.c.bf16 %v1109, %v1109
    %s1111 = smul.u32 6, 4
    %s1112 = smul.addr %s1111, 8
    %s1113 = scalar_lea.vmem [#allocation2], %s1112
    %v1114 = vld [vmem:[%s1113] sm:$0xff]
    %v1115 = vld [vmem:[%s1113 + $0x8] sm:$0xff]
    %v1116 = vld [vmem:[%s1113 + $0x10] sm:$0xff]
    %v1117 = vld [vmem:[%s1113 + $0x18] sm:$0xff]
    %1118 = vmatprep.subr.bf16.mxu0 %v538
    %1119 = vmatpush1.bf16.msra.mxu0 %v537
    %1120 = vmatprep.subr.bf16.mxu0 %v534
    %1121 = vmatpush1.bf16.msra.mxu0 %v533
    %1122 = vmatprep.subr.bf16.mxu0 %v530
    %1123 = vmatpush1.bf16.msra.mxu0 %v529
    %1124 = vmatprep.subr.bf16.mxu0 %v526
    %1125 = vmatpush1.bf16.msra.mxu0 %v525
    %1126 = vmatprep.subr.bf16.mxu0 %v522
    %1127 = vmatpush1.bf16.msra.mxu0 %v521
    %1128 = vmatprep.subr.bf16.mxu0 %v518
    %1129 = vmatpush1.bf16.msra.mxu0 %v517
    %1130 = vmatprep.subr.bf16.mxu0 %v514
    %1131 = vmatpush1.bf16.msra.mxu0 %v513
    %1132 = vmatprep.subr.bf16.mxu0 %v510
    %1133 = vmatpush1.bf16.msra.mxu0 %v509
    %1134 = vmatprep.subr.bf16.mxu0 0
    %1135 = vmatpush2.bf16.msra.mxu0 0
    %1136 = vmatprep.subr.bf16.mxu0 0
    %1137 = vmatpush2.bf16.msra.mxu0 0
    %1138 = vmatprep.subr.bf16.mxu0 0
    %1139 = vmatpush2.bf16.msra.mxu0 0
    %1140 = vmatprep.subr.bf16.mxu0 0
    %1141 = vmatpush2.bf16.msra.mxu0 0
    %1142 = vmatprep.subr.bf16.mxu0 0
    %1143 = vmatpush2.bf16.msra.mxu0 0
    %1144 = vmatprep.subr.bf16.mxu0 0
    %1145 = vmatpush2.bf16.msra.mxu0 0
    %1146 = vmatprep.subr.bf16.mxu0 0
    %1147 = vmatpush2.bf16.msra.mxu0 0
    %1148 = vmatprep.subr.bf16.mxu0 0
    %1149 = vmatpush2.bf16.msra.mxu0 0
    %1150 = vmatprep.mubr.bf16.mxu0 0
    %1151 = vmatmul.mubr.bf16.gmra.mxu0 %v1110
    %v1152 = vpop.f32.mrf.mxu0
    %v1153 = vadd.f32 %v1114, %v1152
    %v1154 = vpop.f32.mrf.mxu0
    %v1155 = vadd.f32 %v1115, %v1154
    %v1156 = vpop.f32.mrf.mxu0
    %v1157 = vpop.f32.mrf.mxu0
    %1158 = vdwg.mxu0
    %1159 = vmatprep.subr.bf16.mxu0 %v540
    %1160 = vmatpush1.bf16.msra.mxu0 %v539
    %1161 = vmatprep.subr.bf16.mxu0 %v536
    %1162 = vmatpush1.bf16.msra.mxu0 %v535
    %1163 = vmatprep.subr.bf16.mxu0 %v532
    %1164 = vmatpush1.bf16.msra.mxu0 %v531
    %1165 = vmatprep.subr.bf16.mxu0 %v528
    %1166 = vmatpush1.bf16.msra.mxu0 %v527
    %1167 = vmatprep.subr.bf16.mxu0 %v524
    %1168 = vmatpush1.bf16.msra.mxu0 %v523
    %1169 = vmatprep.subr.bf16.mxu0 %v520
    %1170 = vmatpush1.bf16.msra.mxu0 %v519
    %1171 = vmatprep.subr.bf16.mxu0 %v516
    %1172 = vmatpush1.bf16.msra.mxu0 %v515
    %1173 = vmatprep.subr.bf16.mxu0 %v512
    %1174 = vmatpush1.bf16.msra.mxu0 %v511
    %1175 = vmatprep.subr.bf16.mxu0 0
    %1176 = vmatpush2.bf16.msra.mxu0 0
    %1177 = vmatprep.subr.bf16.mxu0 0
    %1178 = vmatpush2.bf16.msra.mxu0 0
    %1179 = vmatprep.subr.bf16.mxu0 0
    %1180 = vmatpush2.bf16.msra.mxu0 0
    %1181 = vmatprep.subr.bf16.mxu0 0
    %1182 = vmatpush2.bf16.msra.mxu0 0
    %1183 = vmatprep.subr.bf16.mxu0 0
    %1184 = vmatpush2.bf16.msra.mxu0 0
    %1185 = vmatprep.subr.bf16.mxu0 0
    %1186 = vmatpush2.bf16.msra.mxu0 0
    %1187 = vmatprep.subr.bf16.mxu0 0
    %1188 = vmatpush2.bf16.msra.mxu0 0
    %1189 = vmatprep.subr.bf16.mxu0 0
    %1190 = vmatpush2.bf16.msra.mxu0 0
    %1191 = vmatprep.mubr.bf16.mxu0 0
    %1192 = vmatmul.mubr.bf16.gmra.mxu0 %v1110
    %v1193 = vpop.f32.mrf.mxu0
    %v1194 = vadd.f32 %v1116, %v1193
    %v1195 = vpop.f32.mrf.mxu0
    %v1196 = vadd.f32 %v1117, %v1195
    %v1197 = vpop.f32.mrf.mxu0
    %v1198 = vpop.f32.mrf.mxu0
    %1199 = vdwg.mxu0
    %v1200 = vxor.u32 %v1153, 2147483648
    %v1201 = vxor.u32 %v1155, 2147483648
    %v1202 = vmul.f32 %v1200, 1.442695
    %v1203 = vpow.pop %v1202
    %v1204 = vmul.f32 %v1201, 1.442695
    %v1205 = vpow.pop %v1204
    %v1206 = vadd.f32 %v1203, 1.0
    %v1207 = vadd.f32 %v1205, 1.0
    %v1208 = vrcp.pop %v1206
    %v1209 = vmul.f32 1.0, %v1208
    %v1210 = vrcp.pop %v1207
    %v1211 = vmul.f32 1.0, %v1210
    %v1212 = vmul.f32 %v1209, %v1194
    %v1213 = vadd.f32 %v1196, %v1212
    %v1214 = vtanh.pop %v1213
    %v1215 = vsub.f32 1.0, %v1211
    %v1216 = vmul.f32 %v1215, %v1214
    %v1217 = vmul.f32 %v1211, %v1109
    %v1218 = vadd.f32 %v1216, %v1217
    %v1219 = vpack.c.bf16 %v1218, %v1218
    %s1220 = smul.u32 7, 4
    %s1221 = smul.addr %s1220, 8
    %s1222 = scalar_lea.vmem [#allocation2], %s1221
    %v1223 = vld [vmem:[%s1222] sm:$0xff]
    %v1224 = vld [vmem:[%s1222 + $0x8] sm:$0xff]
    %v1225 = vld [vmem:[%s1222 + $0x10] sm:$0xff]
    %v1226 = vld [vmem:[%s1222 + $0x18] sm:$0xff]
    %1227 = vmatprep.subr.bf16.mxu0 %v538
    %1228 = vmatpush1.bf16.msra.mxu0 %v537
    %1229 = vmatprep.subr.bf16.mxu0 %v534
    %1230 = vmatpush1.bf16.msra.mxu0 %v533
    %1231 = vmatprep.subr.bf16.mxu0 %v530
    %1232 = vmatpush1.bf16.msra.mxu0 %v529
    %1233 = vmatprep.subr.bf16.mxu0 %v526
    %1234 = vmatpush1.bf16.msra.mxu0 %v525
    %1235 = vmatprep.subr.bf16.mxu0 %v522
    %1236 = vmatpush1.bf16.msra.mxu0 %v521
    %1237 = vmatprep.subr.bf16.mxu0 %v518
    %1238 = vmatpush1.bf16.msra.mxu0 %v517
    %1239 = vmatprep.subr.bf16.mxu0 %v514
    %1240 = vmatpush1.bf16.msra.mxu0 %v513
    %1241 = vmatprep.subr.bf16.mxu0 %v510
    %1242 = vmatpush1.bf16.msra.mxu0 %v509
    %1243 = vmatprep.subr.bf16.mxu0 0
    %1244 = vmatpush2.bf16.msra.mxu0 0
    %1245 = vmatprep.subr.bf16.mxu0 0
    %1246 = vmatpush2.bf16.msra.mxu0 0
    %1247 = vmatprep.subr.bf16.mxu0 0
    %1248 = vmatpush2.bf16.msra.mxu0 0
    %1249 = vmatprep.subr.bf16.mxu0 0
    %1250 = vmatpush2.bf16.msra.mxu0 0
    %1251 = vmatprep.subr.bf16.mxu0 0
    %1252 = vmatpush2.bf16.msra.mxu0 0
    %1253 = vmatprep.subr.bf16.mxu0 0
    %1254 = vmatpush2.bf16.msra.mxu0 0
    %1255 = vmatprep.subr.bf16.mxu0 0
    %1256 = vmatpush2.bf16.msra.mxu0 0
    %1257 = vmatprep.subr.bf16.mxu0 0
    %1258 = vmatpush2.bf16.msra.mxu0 0
    %1259 = vmatprep.mubr.bf16.mxu0 0
    %1260 = vmatmul.mubr.bf16.gmra.mxu0 %v1219
    %v1261 = vpop.f32.mrf.mxu0
    %v1262 = vadd.f32 %v1223, %v1261
    %v1263 = vpop.f32.mrf.mxu0
    %v1264 = vadd.f32 %v1224, %v1263
    %v1265 = vpop.f32.mrf.mxu0
    %v1266 = vpop.f32.mrf.mxu0
    %1267 = vdwg.mxu0
    %1268 = vmatprep.subr.bf16.mxu0 %v540
    %1269 = vmatpush1.bf16.msra.mxu0 %v539
    %1270 = vmatprep.subr.bf16.mxu0 %v536
    %1271 = vmatpush1.bf16.msra.mxu0 %v535
    %1272 = vmatprep.subr.bf16.mxu0 %v532
    %1273 = vmatpush1.bf16.msra.mxu0 %v531
    %1274 = vmatprep.subr.bf16.mxu0 %v528
    %1275 = vmatpush1.bf16.msra.mxu0 %v527
    %1276 = vmatprep.subr.bf16.mxu0 %v524
    %1277 = vmatpush1.bf16.msra.mxu0 %v523
    %1278 = vmatprep.subr.bf16.mxu0 %v520
    %1279 = vmatpush1.bf16.msra.mxu0 %v519
    %1280 = vmatprep.subr.bf16.mxu0 %v516
    %1281 = vmatpush1.bf16.msra.mxu0 %v515
    %1282 = vmatprep.subr.bf16.mxu0 %v512
    %1283 = vmatpush1.bf16.msra.mxu0 %v511
    %1284 = vmatprep.subr.bf16.mxu0 0
    %1285 = vmatpush2.bf16.msra.mxu0 0
    %1286 = vmatprep.subr.bf16.mxu0 0
    %1287 = vmatpush2.bf16.msra.mxu0 0
    %1288 = vmatprep.subr.bf16.mxu0 0
    %1289 = vmatpush2.bf16.msra.mxu0 0
    %1290 = vmatprep.subr.bf16.mxu0 0
    %1291 = vmatpush2.bf16.msra.mxu0 0
    %1292 = vmatprep.subr.bf16.mxu0 0
    %1293 = vmatpush2.bf16.msra.mxu0 0
    %1294 = vmatprep.subr.bf16.mxu0 0
    %1295 = vmatpush2.bf16.msra.mxu0 0
    %1296 = vmatprep.subr.bf16.mxu0 0
    %1297 = vmatpush2.bf16.msra.mxu0 0
    %1298 = vmatprep.subr.bf16.mxu0 0
    %1299 = vmatpush2.bf16.msra.mxu0 0
    %1300 = vmatprep.mubr.bf16.mxu0 0
    %1301 = vmatmul.mubr.bf16.gmra.mxu0 %v1219
    %v1302 = vpop.f32.mrf.mxu0
    %v1303 = vadd.f32 %v1225, %v1302
    %v1304 = vpop.f32.mrf.mxu0
    %v1305 = vadd.f32 %v1226, %v1304
    %v1306 = vpop.f32.mrf.mxu0
    %v1307 = vpop.f32.mrf.mxu0
    %1308 = vdwg.mxu0
    %v1309 = vxor.u32 %v1262, 2147483648
    %v1310 = vxor.u32 %v1264, 2147483648
    %v1311 = vmul.f32 %v1309, 1.442695
    %v1312 = vpow.pop %v1311
    %v1313 = vmul.f32 %v1310, 1.442695
    %v1314 = vpow.pop %v1313
    %v1315 = vadd.f32 %v1312, 1.0
    %v1316 = vadd.f32 %v1314, 1.0
    %v1317 = vrcp.pop %v1315
    %v1318 = vmul.f32 1.0, %v1317
    %v1319 = vrcp.pop %v1316
    %v1320 = vmul.f32 1.0, %v1319
    %v1321 = vmul.f32 %v1318, %v1303
    %v1322 = vadd.f32 %v1305, %v1321
    %v1323 = vtanh.pop %v1322
    %v1324 = vsub.f32 1.0, %v1320
    %v1325 = vmul.f32 %v1324, %v1323
    %v1326 = vmul.f32 %v1320, %v1218
    %v1327 = vadd.f32 %v1325, %v1326
    %v1328 = vpack.c.bf16 %v1327, %v1327
    %s1329 = smul.u32 8, 4
    %s1330 = smul.addr %s1329, 8
    %s1331 = scalar_lea.vmem [#allocation2], %s1330
    %v1332 = vld [vmem:[%s1331] sm:$0xff]
    %v1333 = vld [vmem:[%s1331 + $0x8] sm:$0xff]
    %v1334 = vld [vmem:[%s1331 + $0x10] sm:$0xff]
    %v1335 = vld [vmem:[%s1331 + $0x18] sm:$0xff]
    %1336 = vmatprep.subr.bf16.mxu0 %v538
    %1337 = vmatpush1.bf16.msra.mxu0 %v537
    %1338 = vmatprep.subr.bf16.mxu0 %v534
    %1339 = vmatpush1.bf16.msra.mxu0 %v533
    %1340 = vmatprep.subr.bf16.mxu0 %v530
    %1341 = vmatpush1.bf16.msra.mxu0 %v529
    %1342 = vmatprep.subr.bf16.mxu0 %v526
    %1343 = vmatpush1.bf16.msra.mxu0 %v525
    %1344 = vmatprep.subr.bf16.mxu0 %v522
    %1345 = vmatpush1.bf16.msra.mxu0 %v521
    %1346 = vmatprep.subr.bf16.mxu0 %v518
    %1347 = vmatpush1.bf16.msra.mxu0 %v517
    %1348 = vmatprep.subr.bf16.mxu0 %v514
    %1349 = vmatpush1.bf16.msra.mxu0 %v513
    %1350 = vmatprep.subr.bf16.mxu0 %v510
    %1351 = vmatpush1.bf16.msra.mxu0 %v509
    %1352 = vmatprep.subr.bf16.mxu0 0
    %1353 = vmatpush2.bf16.msra.mxu0 0
    %1354 = vmatprep.subr.bf16.mxu0 0
    %1355 = vmatpush2.bf16.msra.mxu0 0
    %1356 = vmatprep.subr.bf16.mxu0 0
    %1357 = vmatpush2.bf16.msra.mxu0 0
    %1358 = vmatprep.subr.bf16.mxu0 0
    %1359 = vmatpush2.bf16.msra.mxu0 0
    %1360 = vmatprep.subr.bf16.mxu0 0
    %1361 = vmatpush2.bf16.msra.mxu0 0
    %1362 = vmatprep.subr.bf16.mxu0 0
    %1363 = vmatpush2.bf16.msra.mxu0 0
    %1364 = vmatprep.subr.bf16.mxu0 0
    %1365 = vmatpush2.bf16.msra.mxu0 0
    %1366 = vmatprep.subr.bf16.mxu0 0
    %1367 = vmatpush2.bf16.msra.mxu0 0
    %1368 = vmatprep.mubr.bf16.mxu0 0
    %1369 = vmatmul.mubr.bf16.gmra.mxu0 %v1328
    %v1370 = vpop.f32.mrf.mxu0
    %v1371 = vadd.f32 %v1332, %v1370
    %v1372 = vpop.f32.mrf.mxu0
    %v1373 = vadd.f32 %v1333, %v1372
    %v1374 = vpop.f32.mrf.mxu0
    %v1375 = vpop.f32.mrf.mxu0
    %1376 = vdwg.mxu0
    %1377 = vmatprep.subr.bf16.mxu0 %v540
    %1378 = vmatpush1.bf16.msra.mxu0 %v539
    %1379 = vmatprep.subr.bf16.mxu0 %v536
    %1380 = vmatpush1.bf16.msra.mxu0 %v535
    %1381 = vmatprep.subr.bf16.mxu0 %v532
    %1382 = vmatpush1.bf16.msra.mxu0 %v531
    %1383 = vmatprep.subr.bf16.mxu0 %v528
    %1384 = vmatpush1.bf16.msra.mxu0 %v527
    %1385 = vmatprep.subr.bf16.mxu0 %v524
    %1386 = vmatpush1.bf16.msra.mxu0 %v523
    %1387 = vmatprep.subr.bf16.mxu0 %v520
    %1388 = vmatpush1.bf16.msra.mxu0 %v519
    %1389 = vmatprep.subr.bf16.mxu0 %v516
    %1390 = vmatpush1.bf16.msra.mxu0 %v515
    %1391 = vmatprep.subr.bf16.mxu0 %v512
    %1392 = vmatpush1.bf16.msra.mxu0 %v511
    %1393 = vmatprep.subr.bf16.mxu0 0
    %1394 = vmatpush2.bf16.msra.mxu0 0
    %1395 = vmatprep.subr.bf16.mxu0 0
    %1396 = vmatpush2.bf16.msra.mxu0 0
    %1397 = vmatprep.subr.bf16.mxu0 0
    %1398 = vmatpush2.bf16.msra.mxu0 0
    %1399 = vmatprep.subr.bf16.mxu0 0
    %1400 = vmatpush2.bf16.msra.mxu0 0
    %1401 = vmatprep.subr.bf16.mxu0 0
    %1402 = vmatpush2.bf16.msra.mxu0 0
    %1403 = vmatprep.subr.bf16.mxu0 0
    %1404 = vmatpush2.bf16.msra.mxu0 0
    %1405 = vmatprep.subr.bf16.mxu0 0
    %1406 = vmatpush2.bf16.msra.mxu0 0
    %1407 = vmatprep.subr.bf16.mxu0 0
    %1408 = vmatpush2.bf16.msra.mxu0 0
    %1409 = vmatprep.mubr.bf16.mxu0 0
    %1410 = vmatmul.mubr.bf16.gmra.mxu0 %v1328
    %v1411 = vpop.f32.mrf.mxu0
    %v1412 = vadd.f32 %v1334, %v1411
    %v1413 = vpop.f32.mrf.mxu0
    %v1414 = vadd.f32 %v1335, %v1413
    %v1415 = vpop.f32.mrf.mxu0
    %v1416 = vpop.f32.mrf.mxu0
    %1417 = vdwg.mxu0
    %v1418 = vxor.u32 %v1371, 2147483648
    %v1419 = vxor.u32 %v1373, 2147483648
    %v1420 = vmul.f32 %v1418, 1.442695
    %v1421 = vpow.pop %v1420
    %v1422 = vmul.f32 %v1419, 1.442695
    %v1423 = vpow.pop %v1422
    %v1424 = vadd.f32 %v1421, 1.0
    %v1425 = vadd.f32 %v1423, 1.0
    %v1426 = vrcp.pop %v1424
    %v1427 = vmul.f32 1.0, %v1426
    %v1428 = vrcp.pop %v1425
    %v1429 = vmul.f32 1.0, %v1428
    %v1430 = vmul.f32 %v1427, %v1412
    %v1431 = vadd.f32 %v1414, %v1430
    %v1432 = vtanh.pop %v1431
    %v1433 = vsub.f32 1.0, %v1429
    %v1434 = vmul.f32 %v1433, %v1432
    %v1435 = vmul.f32 %v1429, %v1327
    %v1436 = vadd.f32 %v1434, %v1435
    %v1437 = vpack.c.bf16 %v1436, %v1436
    %v1438 = vld [vmem:[#allocation6] sm:$0xf]
    %v1439 = vld [vmem:[#allocation6 + $0x4] sm:$0xf]
    %v1440 = vld [vmem:[#allocation6 + $0x8] sm:$0xf]
    %v1441 = vld [vmem:[#allocation6 + $0xc] sm:$0xf]
    %v1442 = vld [vmem:[#allocation6 + $0x10] sm:$0xf]
    %v1443 = vld [vmem:[#allocation6 + $0x14] sm:$0xf]
    %v1444 = vld [vmem:[#allocation6 + $0x18] sm:$0xf]
    %v1445 = vld [vmem:[#allocation6 + $0x1c] sm:$0xf]
    %v1446 = vld [vmem:[#allocation6 + $0x20] sm:$0xf]
    %v1447 = vld [vmem:[#allocation6 + $0x24] sm:$0xf]
    %v1448 = vld [vmem:[#allocation6 + $0x28] sm:$0xf]
    %v1449 = vld [vmem:[#allocation6 + $0x2c] sm:$0xf]
    %v1450 = vld [vmem:[#allocation6 + $0x30] sm:$0xf]
    %v1451 = vld [vmem:[#allocation6 + $0x34] sm:$0xf]
    %v1452 = vld [vmem:[#allocation6 + $0x38] sm:$0xf]
    %v1453 = vld [vmem:[#allocation6 + $0x3c] sm:$0xf]
    %v1454 = vld [vmem:[%s5] sm:$0x1]
    %v1456 = vlaneseq
    %v1457 = vshrl.u32 %v1456, 7
    %v1458 = vsub.s32 0, %v1457
    %v1459 = vrot.slane %v1454, %v1458
    %v1477 = vunpack.c.l.b16 %v1438
    %v1478 = vunpack.c.l.b16 %v1439
    %v1479 = vunpack.c.l.b16 %v1440
    %v1480 = vunpack.c.l.b16 %v1441
    %v1481 = vunpack.c.l.b16 %v1442
    %v1482 = vunpack.c.l.b16 %v1443
    %v1483 = vunpack.c.l.b16 %v1444
    %v1484 = vunpack.c.l.b16 %v1445
    %v1485 = vunpack.c.l.b16 %v1446
    %v1486 = vunpack.c.l.b16 %v1447
    %v1487 = vunpack.c.l.b16 %v1448
    %v1488 = vunpack.c.l.b16 %v1449
    %v1489 = vunpack.c.l.b16 %v1450
    %v1490 = vunpack.c.l.b16 %v1451
    %v1491 = vunpack.c.l.b16 %v1452
    %v1492 = vunpack.c.l.b16 %v1453
    %v1493 = vpack.c.b16 %v1478, %v1477
    %v1494 = vpack.c.b16 %v1480, %v1479
    %v1495 = vpack.c.b16 %v1482, %v1481
    %v1496 = vpack.c.b16 %v1484, %v1483
    %v1497 = vpack.c.b16 %v1486, %v1485
    %v1498 = vpack.c.b16 %v1488, %v1487
    %v1499 = vpack.c.b16 %v1490, %v1489
    %v1500 = vpack.c.b16 %v1492, %v1491
    %1509 = vmatprep.subr.bf16.mxu0 0
    %1510 = vmatpush1.bf16.msra.mxu0 %v1500
    %1511 = vmatprep.subr.bf16.mxu0 0
    %1512 = vmatpush1.bf16.msra.mxu0 %v1499
    %1513 = vmatprep.subr.bf16.mxu0 0
    %1514 = vmatpush1.bf16.msra.mxu0 %v1498
    %1515 = vmatprep.subr.bf16.mxu0 0
    %1516 = vmatpush1.bf16.msra.mxu0 %v1497
    %1517 = vmatprep.subr.bf16.mxu0 0
    %1518 = vmatpush1.bf16.msra.mxu0 %v1496
    %1519 = vmatprep.subr.bf16.mxu0 0
    %1520 = vmatpush1.bf16.msra.mxu0 %v1495
    %1521 = vmatprep.subr.bf16.mxu0 0
    %1522 = vmatpush1.bf16.msra.mxu0 %v1494
    %1523 = vmatprep.subr.bf16.mxu0 0
    %1524 = vmatpush1.bf16.msra.mxu0 %v1493
    %1525 = vmatprep.subr.bf16.mxu0 0
    %1526 = vmatpush2.bf16.msra.mxu0 0
    %1527 = vmatprep.subr.bf16.mxu0 0
    %1528 = vmatpush2.bf16.msra.mxu0 0
    %1529 = vmatprep.subr.bf16.mxu0 0
    %1530 = vmatpush2.bf16.msra.mxu0 0
    %1531 = vmatprep.subr.bf16.mxu0 0
    %1532 = vmatpush2.bf16.msra.mxu0 0
    %1533 = vmatprep.subr.bf16.mxu0 0
    %1534 = vmatpush2.bf16.msra.mxu0 0
    %1535 = vmatprep.subr.bf16.mxu0 0
    %1536 = vmatpush2.bf16.msra.mxu0 0
    %1537 = vmatprep.subr.bf16.mxu0 0
    %1538 = vmatpush2.bf16.msra.mxu0 0
    %1539 = vmatprep.subr.bf16.mxu0 0
    %1540 = vmatpush2.bf16.msra.mxu0 0
    %1541 = vmatprep.mubr.bf16.mxu0 0
    %1542 = vmatmul.mubr.bf16.gmra.mxu0 %v1437
    %v1543 = vpop.f32.mrf.mxu0
    %v1544 = vadd.f32 %v1459, %v1543
    %v1545 = vpop.f32.mrf.mxu0
    %v1546 = vpop.f32.mrf.mxu0
    %v1547 = vpop.f32.mrf.mxu0
    %1548 = vdwg.mxu0
    %1549 = vst [vmem:[#allocation8] sm:$0xff] %v1544
    // Predicated region
    $region34: #{tpu_custom_call.1} parent=1 // pred_check
      _
    $region35: #{tpu_custom_call.1} parent=1 // pred_check_branch
      %1551 = sbr.rel (0) target = $region37
    $region36: #{tpu_custom_call.1} parent=1 // pred_region
      %s1553 = ssub.s32 128, 128
      %1554 = vsyncadd [#allocation5], %s1553
      %s1556 = sshll.u32 [#allocation8], 4
      %s1557 = int_to_ptr.vmem [resolvable:$true] %s1556
      %1559 = dma.vmem_to_hbm [thread:$0]  %s1557, 128, %s6, [#allocation5]
    $region37: #{tpu_custom_call.1} parent=1 // pred_fallthru
      _
    // Predicated region
    $region38: #{tpu_custom_call.1} parent=1 // pred_check
      _
    $region39: #{tpu_custom_call.1} parent=1 // pred_check_branch
      %1561 = sbr.rel (0) target = $region41
    $region40: #{tpu_custom_call.1} parent=1 // pred_region
      %1562 = dma.done [#allocation5], 128
    $region41: #{tpu_custom_call.1} parent=1 // pred_fallthru
      _
    %1563 = vsyncpa [#allocation4], 1
    %1564 = vsyncpa [#allocation7], 1
    %1565 = vsyncpa [#allocation5], 1

</llo_original>
